<compile_context>
chip_gen: v6e
topology: v6e:2x2x1
jax: 0.10.0
libtpu: 0.0.40
codegen_flags: <defaults>
</compile_context>

<pallas_src>
import jax
import jax.numpy as jnp
import numpy as np
from jax.experimental import pallas as pl
from jax.experimental.pallas import tpu as pltpu

C = 16          # hidden channel width
BN_EPS = 1e-5


def _make_generator_kernel(N, L):
    """Single-invocation kernel; activations are (channels, N*L) with L on lanes."""
    NL = N * L

    def kernel(x_ref,
               w0_ref, b0_ref,
               w1a_ref, g1a_ref, be1a_ref,
               w1b_ref, g1b_ref, be1b_ref,
               w2a_ref, g2a_ref, be2a_ref,
               w2b_ref, g2b_ref, be2b_ref,
               wf_ref, bf_ref,
               out_ref):
        # ---- hoisted halo masks: position within sample along the merged lane axis ----
        pos = jax.lax.broadcasted_iota(jnp.int32, (1, NL), 1) % L

        def make_mask(d):                       # single-sided: sign(d) is static
            return (pos < (L - d)) if d > 0 else (pos >= (-d))

        m1 = {d: make_mask(d) for d in (-3, -2, -1, 1, 2, 3)}        # (1, NL)
        m16 = {d: jnp.broadcast_to(m1[d], (C, NL)) for d in (-1, 1)}  # (16, NL)

        def shift_lanes(arr, d, mask):
            """y[..., i] = arr[..., i+d] with zeros outside the owning sample."""
            if d == 0:
                return arr
            rolled = pltpu.roll(arr, shift=(-d) % NL, axis=1)
            return jnp.where(mask, rolled, 0.0)

        def conv16(h, wp_ref):
            # 16->16 conv (k=3, p=1): all taps folded into one MXU matmul, K*16 contraction.
            stack = jnp.concatenate(
                [shift_lanes(h, -1, m16[-1]), h, shift_lanes(h, 1, m16[1])],
                axis=0)                                              # (48, NL)
            return jnp.dot(wp_ref[...], stack,
                           preferred_element_type=jnp.float32)       # (16, NL)

        def batchnorm(h, g_ref, be_ref):
            # training-mode BN: per-channel stats over all N*L positions, biased variance.
            mean = jnp.mean(h, axis=1, keepdims=True)                 # (16, 1)
            msq = jnp.mean(h * h, axis=1, keepdims=True)              # (16, 1)
            var = msq - mean * mean
            scale = g_ref[...] * jax.lax.rsqrt(var + BN_EPS)          # (16, 1)
            offset = be_ref[...] - mean * scale                       # (16, 1)
            return h * scale + offset

        def res_block(h, wa, ga, bea, wb, gb, beb):
            y = jnp.maximum(batchnorm(conv16(h, wa), ga, bea), 0.0)
            y = batchnorm(conv16(y, wb), gb, beb)
            return h + y

        x = x_ref[...].astype(jnp.float32)                            # (1, NL)

        # ---- initial Conv1d(1->16, k=7, p=3) + ReLU on the MXU ----
        taps = [shift_lanes(x, k - 3, m1.get(k - 3)) for k in range(7)]
        xs = jnp.concatenate(taps + [jnp.zeros_like(x)], axis=0)      # (8, NL), row 7 zero
        h = jnp.dot(w0_ref[...], xs,
                    preferred_element_type=jnp.float32) + b0_ref[...]  # (16, NL)
        h = jnp.maximum(h, 0.0)

        h = res_block(h, w1a_ref, g1a_ref, be1a_ref, w1b_ref, g1b_ref, be1b_ref)
        h = res_block(h, w2a_ref, g2a_ref, be2a_ref, w2b_ref, g2b_ref, be2b_ref)

        # ---- final Conv1d(16->1, k=7, p=3) + Tanh: contract-then-shift ----
        t = jnp.dot(wf_ref[...], h, preferred_element_type=jnp.float32)   # (8, NL)
        y = shift_lanes(t[0:1, :], -3, m1[-3])
        for k in range(1, 7):
            d = k - 3
            y = y + shift_lanes(t[k:k + 1, :], d, m1.get(d))               # (1, NL)
        out_ref[...] = jnp.tanh(y + bf_ref[...])

    return kernel


def _pack_params(params):
    """Pack natural-shaped params ((K,Cin,Cout) conv weights, (C,) vectors) for the kernel."""
    def pack16(w):            # (3,16,16) -> (16, 48): Wp[o, k*16+c] = w[k, c, o]
        return jnp.transpose(w, (2, 0, 1)).reshape(C, -1)

    def col(v):               # (c,) -> (c, 1): per-channel params on sublanes
        return v.reshape(-1, 1)

    p = params
    # initial conv: (7,1,16) -> (16, 8) with zero 8th column (MXU-friendly contraction).
    w0p = jnp.zeros((C, 8), jnp.float32).at[:, :7].set(jnp.transpose(p["w0"][:, 0, :]))
    flat = [w0p, col(p["b0"])]
    # res-block convs feed directly into training-mode BN -> their biases cancel; drop them.
    for pre in ("1", "2"):
        flat += [pack16(p[f"w{pre}a"]), col(p[f"g{pre}a"]), col(p[f"be{pre}a"]),
                 pack16(p[f"w{pre}b"]), col(p[f"g{pre}b"]), col(p[f"be{pre}b"])]
    # final conv: (7,16,1) -> (8, 16) with zero 8th row.
    wf = jnp.zeros((8, C), jnp.float32).at[:7, :].set(p["wf"][:, :, 0])
    flat += [wf, p["bf"].reshape(1, 1)]
    return flat


@jax.jit
def generator_forward(x_ncl, params):
    """x_ncl: (N, 1, L) float32 (PyTorch NCL). Returns (N, 1, L) float32."""
    N, cin, L = x_ncl.shape
    assert cin == 1
    NL = N * L
    flat = _pack_params(params)
    kernel = _make_generator_kernel(N, L)
    vmem = pltpu.MemorySpace.VMEM

    x2d = x_ncl.astype(jnp.float32).reshape(1, NL)   # samples concatenated along lanes
    out2d = pl.pallas_call(
        kernel,
        out_shape=jax.ShapeDtypeStruct((1, NL), jnp.float32),
        in_specs=[pl.BlockSpec(memory_space=vmem)] * (1 + len(flat)),
        out_specs=pl.BlockSpec(memory_space=vmem),
        compiler_params=pltpu.CompilerParams(vmem_limit_bytes=32 * 1024 * 1024),
    )(x2d, *flat)
    return out2d.reshape(N, 1, L)


def init_params(key):
    """Deterministic synthetic parameters; conv weights stored as (K, Cin, Cout)."""
    ks = iter(jax.random.split(key, 20))

    def conv_w(k, ksize, cin, cout):
        return 0.1 * jax.random.normal(k, (ksize, cin, cout), jnp.float32)

    def vec(k, n, base=0.0):
        return base + 0.1 * jax.random.normal(k, (n,), jnp.float32)

    p = {"w0": conv_w(next(ks), 7, 1, C), "b0": vec(next(ks), C)}
    for pre in ("1", "2"):
        p[f"w{pre}a"] = conv_w(next(ks), 3, C, C)
        p[f"b{pre}a"] = vec(next(ks), C)
        p[f"g{pre}a"] = vec(next(ks), C, base=1.0)
        p[f"be{pre}a"] = vec(next(ks), C)
        p[f"w{pre}b"] = conv_w(next(ks), 3, C, C)
        p[f"b{pre}b"] = vec(next(ks), C)
        p[f"g{pre}b"] = vec(next(ks), C, base=1.0)
        p[f"be{pre}b"] = vec(next(ks), C)
    p["wf"] = conv_w(next(ks), 7, C, 1)
    p["bf"] = vec(next(ks), 1)
    return p


def reference_forward(x_ncl, params):
    """Plain-JAX reference with identical math (for validation), NCL layout."""
    x = x_ncl.astype(jnp.float32)
    L = x.shape[2]

    def conv(h, w, b, P):            # h: (N,Cin,L), w: (K,Cin,Cout), b: (Cout,)
        K = w.shape[0]
        hp = jnp.pad(h, ((0, 0), (0, 0), (P, P)))
        acc = sum(jnp.einsum("ncl,co->nol", hp[:, :, k:k + L], w[k]) for k in range(K))
        return acc + b[None, :, None]

    def bn(h, g, be):
        m = h.mean(axis=(0, 2), keepdims=True)
        v = jnp.square(h - m).mean(axis=(0, 2), keepdims=True)
        return (h - m) * jax.lax.rsqrt(v + BN_EPS) * g[None, :, None] + be[None, :, None]

    p = params
    h = jax.nn.relu(conv(x, p["w0"], p["b0"], 3))
    for pre in ("1", "2"):
        y = conv(h, p[f"w{pre}a"], p[f"b{pre}a"], 1)
        y = jax.nn.relu(bn(y, p[f"g{pre}a"], p[f"be{pre}a"]))
        y = conv(y, p[f"w{pre}b"], p[f"b{pre}b"], 1)
        y = bn(y, p[f"g{pre}b"], p[f"be{pre}b"])
        h = h + y
    return jnp.tanh(conv(h, p["wf"], p["bf"], 3))


if __name__ == "__main__":
    key = jax.random.PRNGKey(0)
    k_x, k_p = jax.random.split(key)

    N, L = 2, 128
    x = jax.random.normal(k_x, (N, 1, L), jnp.float32)   # PyTorch-style (N, C=1, L)
    params = init_params(k_p)

    out = jax.block_until_ready(generator_forward(x, params))

    ref = reference_forward(x, params)
    np.testing.assert_allclose(np.asarray(out), np.asarray(ref), rtol=1e-4, atol=1e-4)
    assert out.shape == (N, 1, L)

    print("KERNEL_OK")
</pallas_src>

<mosaic_0001>
module attributes {stable_mosaic.version = 11 : i64} {
  func.func @kernel(%arg0: memref<1x256xf32, #tpu.memory_space<vmem>>, %arg1: memref<16x8xf32, #tpu.memory_space<vmem>>, %arg2: memref<16x1xf32, #tpu.memory_space<vmem>>, %arg3: memref<16x48xf32, #tpu.memory_space<vmem>>, %arg4: memref<16x1xf32, #tpu.memory_space<vmem>>, %arg5: memref<16x1xf32, #tpu.memory_space<vmem>>, %arg6: memref<16x48xf32, #tpu.memory_space<vmem>>, %arg7: memref<16x1xf32, #tpu.memory_space<vmem>>, %arg8: memref<16x1xf32, #tpu.memory_space<vmem>>, %arg9: memref<16x48xf32, #tpu.memory_space<vmem>>, %arg10: memref<16x1xf32, #tpu.memory_space<vmem>>, %arg11: memref<16x1xf32, #tpu.memory_space<vmem>>, %arg12: memref<16x48xf32, #tpu.memory_space<vmem>>, %arg13: memref<16x1xf32, #tpu.memory_space<vmem>>, %arg14: memref<16x1xf32, #tpu.memory_space<vmem>>, %arg15: memref<8x16xf32, #tpu.memory_space<vmem>>, %arg16: memref<1x1xf32, #tpu.memory_space<vmem>>, %arg17: memref<1x256xf32, #tpu.memory_space<vmem>>) attributes {dimension_semantics = [], scalar_prefetch = 0 : i64, scratch_operands = 0 : i64, tpu.core_type = #tpu.core_type<tc>} {
    %0 = tpu.iota {dimensions = array<i32: 1>} : vector<1x256xi32>
    %c128_i32 = arith.constant 128 : i32
    %c0_i32 = arith.constant 0 : i32
    %1 = arith.cmpi eq, %c128_i32, %c0_i32 : i32
    %c1_i32 = arith.constant 1 : i32
    %2 = arith.select %1, %c1_i32, %c128_i32 : i32
    %3 = vector.broadcast %2 : i32 to vector<1x256xi32>
    %4 = arith.remsi %0, %3 : vector<1x256xi32>
    %c0_i32_0 = arith.constant 0 : i32
    %5 = vector.broadcast %c0_i32_0 : i32 to vector<1x256xi32>
    %6 = arith.cmpi ne, %4, %5 : vector<1x256xi32>
    %c0_i32_1 = arith.constant 0 : i32
    %7 = vector.broadcast %c0_i32_1 : i32 to vector<1x256xi32>
    %8 = arith.cmpi slt, %4, %7 : vector<1x256xi32>
    %c0_i32_2 = arith.constant 0 : i32
    %9 = arith.cmpi slt, %2, %c0_i32_2 : i32
    %10 = vector.broadcast %9 : i1 to vector<1x256xi1>
    %11 = vector.broadcast %10 : vector<1x256xi1> to vector<1x256xi1>
    %12 = arith.xori %8, %11 : vector<1x256xi1>
    %13 = arith.andi %12, %6 : vector<1x256xi1>
    %14 = vector.broadcast %2 : i32 to vector<1x256xi32>
    %15 = arith.addi %4, %14 : vector<1x256xi32>
    %16 = arith.select %13, %15, %4 : vector<1x256xi1>, vector<1x256xi32>
    %c3_i32 = arith.constant 3 : i32
    %17 = vector.broadcast %c3_i32 : i32 to vector<1x256xi32>
    %18 = arith.cmpi sge, %16, %17 : vector<1x256xi32>
    %c2_i32 = arith.constant 2 : i32
    %19 = vector.broadcast %c2_i32 : i32 to vector<1x256xi32>
    %20 = arith.cmpi sge, %16, %19 : vector<1x256xi32>
    %c1_i32_3 = arith.constant 1 : i32
    %21 = vector.broadcast %c1_i32_3 : i32 to vector<1x256xi32>
    %22 = arith.cmpi sge, %16, %21 : vector<1x256xi32>
    %c127_i32 = arith.constant 127 : i32
    %23 = vector.broadcast %c127_i32 : i32 to vector<1x256xi32>
    %24 = arith.cmpi slt, %16, %23 : vector<1x256xi32>
    %c126_i32 = arith.constant 126 : i32
    %25 = vector.broadcast %c126_i32 : i32 to vector<1x256xi32>
    %26 = arith.cmpi slt, %16, %25 : vector<1x256xi32>
    %c125_i32 = arith.constant 125 : i32
    %27 = vector.broadcast %c125_i32 : i32 to vector<1x256xi32>
    %28 = arith.cmpi slt, %16, %27 : vector<1x256xi32>
    %29 = vector.shape_cast %22 : vector<1x256xi1> to vector<1x256xi1>
    %30 = vector.broadcast %29 : vector<1x256xi1> to vector<16x256xi1>
    %31 = vector.shape_cast %24 : vector<1x256xi1> to vector<1x256xi1>
    %32 = vector.broadcast %31 : vector<1x256xi1> to vector<16x256xi1>
    %c0 = arith.constant 0 : index
    %c0_4 = arith.constant 0 : index
    %33 = vector.load %arg0[%c0, %c0_4] : memref<1x256xf32, #tpu.memory_space<vmem>>, vector<1x256xf32>
    %c3_i32_5 = arith.constant 3 : i32
    %34 = tpu.dynamic_rotate %33 by %c3_i32_5 dim 1 : vector<1x256xf32>, i32 -> vector<1x256xf32>
    %cst = arith.constant 0.000000e+00 : f32
    %35 = vector.broadcast %cst : f32 to vector<1x256xf32>
    %36 = arith.select %18, %34, %35 : vector<1x256xi1>, vector<1x256xf32>
    %c2_i32_6 = arith.constant 2 : i32
    %37 = tpu.dynamic_rotate %33 by %c2_i32_6 dim 1 : vector<1x256xf32>, i32 -> vector<1x256xf32>
    %cst_7 = arith.constant 0.000000e+00 : f32
    %38 = vector.broadcast %cst_7 : f32 to vector<1x256xf32>
    %39 = arith.select %20, %37, %38 : vector<1x256xi1>, vector<1x256xf32>
    %c1_i32_8 = arith.constant 1 : i32
    %40 = tpu.dynamic_rotate %33 by %c1_i32_8 dim 1 : vector<1x256xf32>, i32 -> vector<1x256xf32>
    %cst_9 = arith.constant 0.000000e+00 : f32
    %41 = vector.broadcast %cst_9 : f32 to vector<1x256xf32>
    %42 = arith.select %22, %40, %41 : vector<1x256xi1>, vector<1x256xf32>
    %c255_i32 = arith.constant 255 : i32
    %43 = tpu.dynamic_rotate %33 by %c255_i32 dim 1 : vector<1x256xf32>, i32 -> vector<1x256xf32>
    %cst_10 = arith.constant 0.000000e+00 : f32
    %44 = vector.broadcast %cst_10 : f32 to vector<1x256xf32>
    %45 = arith.select %24, %43, %44 : vector<1x256xi1>, vector<1x256xf32>
    %c254_i32 = arith.constant 254 : i32
    %46 = tpu.dynamic_rotate %33 by %c254_i32 dim 1 : vector<1x256xf32>, i32 -> vector<1x256xf32>
    %cst_11 = arith.constant 0.000000e+00 : f32
    %47 = vector.broadcast %cst_11 : f32 to vector<1x256xf32>
    %48 = arith.select %26, %46, %47 : vector<1x256xi1>, vector<1x256xf32>
    %c253_i32 = arith.constant 253 : i32
    %49 = tpu.dynamic_rotate %33 by %c253_i32 dim 1 : vector<1x256xf32>, i32 -> vector<1x256xf32>
    %cst_12 = arith.constant 0.000000e+00 : f32
    %50 = vector.broadcast %cst_12 : f32 to vector<1x256xf32>
    %51 = arith.select %28, %49, %50 : vector<1x256xi1>, vector<1x256xf32>
    %cst_13 = arith.constant 0.000000e+00 : f32
    %52 = vector.broadcast %cst_13 : f32 to vector<1x256xf32>
    %53 = tpu.concatenate %36, %39, %42, %33, %45, %48, %51, %52 in 0 : vector<1x256xf32>, vector<1x256xf32>, vector<1x256xf32>, vector<1x256xf32>, vector<1x256xf32>, vector<1x256xf32>, vector<1x256xf32>, vector<1x256xf32> -> vector<8x256xf32>
    %c0_14 = arith.constant 0 : index
    %c0_15 = arith.constant 0 : index
    %54 = vector.load %arg1[%c0_14, %c0_15] : memref<16x8xf32, #tpu.memory_space<vmem>>, vector<16x8xf32>
    %cst_16 = arith.constant dense<0.000000e+00> : vector<16x256xf32>
    %55 = tpu.matmul %54, %53, %cst_16 {dimension_numbers = #tpu.dot_dimension_numbers<[1], [0], [0], [1], [0, 0, 1, 1], [], []>} : vector<16x8xf32>, vector<8x256xf32>, vector<16x256xf32> -> vector<16x256xf32>
    %c0_17 = arith.constant 0 : index
    %c0_18 = arith.constant 0 : index
    %56 = vector.load %arg2[%c0_17, %c0_18] : memref<16x1xf32, #tpu.memory_space<vmem>>, vector<16x1xf32>
    %57 = vector.broadcast %56 : vector<16x1xf32> to vector<16x256xf32>
    %58 = arith.addf %55, %57 : vector<16x256xf32>
    %cst_19 = arith.constant 0.000000e+00 : f32
    %59 = vector.broadcast %cst_19 : f32 to vector<16x256xf32>
    %60 = arith.maximumf %58, %59 : vector<16x256xf32>
    %c1_i32_20 = arith.constant 1 : i32
    %61 = tpu.dynamic_rotate %60 by %c1_i32_20 dim 1 : vector<16x256xf32>, i32 -> vector<16x256xf32>
    %cst_21 = arith.constant 0.000000e+00 : f32
    %62 = vector.broadcast %cst_21 : f32 to vector<16x256xf32>
    %63 = arith.select %30, %61, %62 : vector<16x256xi1>, vector<16x256xf32>
    %c255_i32_22 = arith.constant 255 : i32
    %64 = tpu.dynamic_rotate %60 by %c255_i32_22 dim 1 : vector<16x256xf32>, i32 -> vector<16x256xf32>
    %cst_23 = arith.constant 0.000000e+00 : f32
    %65 = vector.broadcast %cst_23 : f32 to vector<16x256xf32>
    %66 = arith.select %32, %64, %65 : vector<16x256xi1>, vector<16x256xf32>
    %67 = tpu.concatenate %63, %60, %66 in 0 : vector<16x256xf32>, vector<16x256xf32>, vector<16x256xf32> -> vector<48x256xf32>
    %c0_24 = arith.constant 0 : index
    %c0_25 = arith.constant 0 : index
    %68 = vector.load %arg3[%c0_24, %c0_25] : memref<16x48xf32, #tpu.memory_space<vmem>>, vector<16x48xf32>
    %cst_26 = arith.constant dense<0.000000e+00> : vector<16x256xf32>
    %69 = tpu.matmul %68, %67, %cst_26 {dimension_numbers = #tpu.dot_dimension_numbers<[1], [0], [0], [1], [0, 0, 1, 1], [], []>} : vector<16x48xf32>, vector<48x256xf32>, vector<16x256xf32> -> vector<16x256xf32>
    %cst_27 = arith.constant dense<0.000000e+00> : vector<16xf32>
    %70 = vector.multi_reduction <add>, %69, %cst_27 [1] : vector<16x256xf32> to vector<16xf32>
    %71 = vector.shape_cast %70 : vector<16xf32> to vector<16x1xf32>
    %cst_28 = arith.constant 2.560000e+02 : f32
    %72 = vector.broadcast %cst_28 : f32 to vector<16x1xf32>
    %73 = arith.divf %71, %72 : vector<16x1xf32>
    %74 = arith.mulf %69, %69 : vector<16x256xf32>
    %cst_29 = arith.constant dense<0.000000e+00> : vector<16xf32>
    %75 = vector.multi_reduction <add>, %74, %cst_29 [1] : vector<16x256xf32> to vector<16xf32>
    %76 = vector.shape_cast %75 : vector<16xf32> to vector<16x1xf32>
    %cst_30 = arith.constant 2.560000e+02 : f32
    %77 = vector.broadcast %cst_30 : f32 to vector<16x1xf32>
    %78 = arith.divf %76, %77 : vector<16x1xf32>
    %79 = arith.mulf %73, %73 : vector<16x1xf32>
    %80 = arith.subf %78, %79 : vector<16x1xf32>
    %c0_31 = arith.constant 0 : index
    %c0_32 = arith.constant 0 : index
    %81 = vector.load %arg4[%c0_31, %c0_32] : memref<16x1xf32, #tpu.memory_space<vmem>>, vector<16x1xf32>
    %cst_33 = arith.constant 9.99999974E-6 : f32
    %82 = vector.broadcast %cst_33 : f32 to vector<16x1xf32>
    %83 = arith.addf %80, %82 : vector<16x1xf32>
    %84 = math.rsqrt %83 : vector<16x1xf32>
    %85 = arith.mulf %81, %84 : vector<16x1xf32>
    %c0_34 = arith.constant 0 : index
    %c0_35 = arith.constant 0 : index
    %86 = vector.load %arg5[%c0_34, %c0_35] : memref<16x1xf32, #tpu.memory_space<vmem>>, vector<16x1xf32>
    %87 = arith.mulf %73, %85 : vector<16x1xf32>
    %88 = arith.subf %86, %87 : vector<16x1xf32>
    %89 = vector.broadcast %85 : vector<16x1xf32> to vector<16x256xf32>
    %90 = arith.mulf %69, %89 : vector<16x256xf32>
    %91 = vector.broadcast %88 : vector<16x1xf32> to vector<16x256xf32>
    %92 = arith.addf %90, %91 : vector<16x256xf32>
    %cst_36 = arith.constant 0.000000e+00 : f32
    %93 = vector.broadcast %cst_36 : f32 to vector<16x256xf32>
    %94 = arith.maximumf %92, %93 : vector<16x256xf32>
    %c1_i32_37 = arith.constant 1 : i32
    %95 = tpu.dynamic_rotate %94 by %c1_i32_37 dim 1 : vector<16x256xf32>, i32 -> vector<16x256xf32>
    %cst_38 = arith.constant 0.000000e+00 : f32
    %96 = vector.broadcast %cst_38 : f32 to vector<16x256xf32>
    %97 = arith.select %30, %95, %96 : vector<16x256xi1>, vector<16x256xf32>
    %c255_i32_39 = arith.constant 255 : i32
    %98 = tpu.dynamic_rotate %94 by %c255_i32_39 dim 1 : vector<16x256xf32>, i32 -> vector<16x256xf32>
    %cst_40 = arith.constant 0.000000e+00 : f32
    %99 = vector.broadcast %cst_40 : f32 to vector<16x256xf32>
    %100 = arith.select %32, %98, %99 : vector<16x256xi1>, vector<16x256xf32>
    %101 = tpu.concatenate %97, %94, %100 in 0 : vector<16x256xf32>, vector<16x256xf32>, vector<16x256xf32> -> vector<48x256xf32>
    %c0_41 = arith.constant 0 : index
    %c0_42 = arith.constant 0 : index
    %102 = vector.load %arg6[%c0_41, %c0_42] : memref<16x48xf32, #tpu.memory_space<vmem>>, vector<16x48xf32>
    %cst_43 = arith.constant dense<0.000000e+00> : vector<16x256xf32>
    %103 = tpu.matmul %102, %101, %cst_43 {dimension_numbers = #tpu.dot_dimension_numbers<[1], [0], [0], [1], [0, 0, 1, 1], [], []>} : vector<16x48xf32>, vector<48x256xf32>, vector<16x256xf32> -> vector<16x256xf32>
    %cst_44 = arith.constant dense<0.000000e+00> : vector<16xf32>
    %104 = vector.multi_reduction <add>, %103, %cst_44 [1] : vector<16x256xf32> to vector<16xf32>
    %105 = vector.shape_cast %104 : vector<16xf32> to vector<16x1xf32>
    %cst_45 = arith.constant 2.560000e+02 : f32
    %106 = vector.broadcast %cst_45 : f32 to vector<16x1xf32>
    %107 = arith.divf %105, %106 : vector<16x1xf32>
    %108 = arith.mulf %103, %103 : vector<16x256xf32>
    %cst_46 = arith.constant dense<0.000000e+00> : vector<16xf32>
    %109 = vector.multi_reduction <add>, %108, %cst_46 [1] : vector<16x256xf32> to vector<16xf32>
    %110 = vector.shape_cast %109 : vector<16xf32> to vector<16x1xf32>
    %cst_47 = arith.constant 2.560000e+02 : f32
    %111 = vector.broadcast %cst_47 : f32 to vector<16x1xf32>
    %112 = arith.divf %110, %111 : vector<16x1xf32>
    %113 = arith.mulf %107, %107 : vector<16x1xf32>
    %114 = arith.subf %112, %113 : vector<16x1xf32>
    %c0_48 = arith.constant 0 : index
    %c0_49 = arith.constant 0 : index
    %115 = vector.load %arg7[%c0_48, %c0_49] : memref<16x1xf32, #tpu.memory_space<vmem>>, vector<16x1xf32>
    %cst_50 = arith.constant 9.99999974E-6 : f32
    %116 = vector.broadcast %cst_50 : f32 to vector<16x1xf32>
    %117 = arith.addf %114, %116 : vector<16x1xf32>
    %118 = math.rsqrt %117 : vector<16x1xf32>
    %119 = arith.mulf %115, %118 : vector<16x1xf32>
    %c0_51 = arith.constant 0 : index
    %c0_52 = arith.constant 0 : index
    %120 = vector.load %arg8[%c0_51, %c0_52] : memref<16x1xf32, #tpu.memory_space<vmem>>, vector<16x1xf32>
    %121 = arith.mulf %107, %119 : vector<16x1xf32>
    %122 = arith.subf %120, %121 : vector<16x1xf32>
    %123 = vector.broadcast %119 : vector<16x1xf32> to vector<16x256xf32>
    %124 = arith.mulf %103, %123 : vector<16x256xf32>
    %125 = vector.broadcast %122 : vector<16x1xf32> to vector<16x256xf32>
    %126 = arith.addf %124, %125 : vector<16x256xf32>
    %127 = arith.addf %60, %126 : vector<16x256xf32>
    %c1_i32_53 = arith.constant 1 : i32
    %128 = tpu.dynamic_rotate %127 by %c1_i32_53 dim 1 : vector<16x256xf32>, i32 -> vector<16x256xf32>
    %cst_54 = arith.constant 0.000000e+00 : f32
    %129 = vector.broadcast %cst_54 : f32 to vector<16x256xf32>
    %130 = arith.select %30, %128, %129 : vector<16x256xi1>, vector<16x256xf32>
    %c255_i32_55 = arith.constant 255 : i32
    %131 = tpu.dynamic_rotate %127 by %c255_i32_55 dim 1 : vector<16x256xf32>, i32 -> vector<16x256xf32>
    %cst_56 = arith.constant 0.000000e+00 : f32
    %132 = vector.broadcast %cst_56 : f32 to vector<16x256xf32>
    %133 = arith.select %32, %131, %132 : vector<16x256xi1>, vector<16x256xf32>
    %134 = tpu.concatenate %130, %127, %133 in 0 : vector<16x256xf32>, vector<16x256xf32>, vector<16x256xf32> -> vector<48x256xf32>
    %c0_57 = arith.constant 0 : index
    %c0_58 = arith.constant 0 : index
    %135 = vector.load %arg9[%c0_57, %c0_58] : memref<16x48xf32, #tpu.memory_space<vmem>>, vector<16x48xf32>
    %cst_59 = arith.constant dense<0.000000e+00> : vector<16x256xf32>
    %136 = tpu.matmul %135, %134, %cst_59 {dimension_numbers = #tpu.dot_dimension_numbers<[1], [0], [0], [1], [0, 0, 1, 1], [], []>} : vector<16x48xf32>, vector<48x256xf32>, vector<16x256xf32> -> vector<16x256xf32>
    %cst_60 = arith.constant dense<0.000000e+00> : vector<16xf32>
    %137 = vector.multi_reduction <add>, %136, %cst_60 [1] : vector<16x256xf32> to vector<16xf32>
    %138 = vector.shape_cast %137 : vector<16xf32> to vector<16x1xf32>
    %cst_61 = arith.constant 2.560000e+02 : f32
    %139 = vector.broadcast %cst_61 : f32 to vector<16x1xf32>
    %140 = arith.divf %138, %139 : vector<16x1xf32>
    %141 = arith.mulf %136, %136 : vector<16x256xf32>
    %cst_62 = arith.constant dense<0.000000e+00> : vector<16xf32>
    %142 = vector.multi_reduction <add>, %141, %cst_62 [1] : vector<16x256xf32> to vector<16xf32>
    %143 = vector.shape_cast %142 : vector<16xf32> to vector<16x1xf32>
    %cst_63 = arith.constant 2.560000e+02 : f32
    %144 = vector.broadcast %cst_63 : f32 to vector<16x1xf32>
    %145 = arith.divf %143, %144 : vector<16x1xf32>
    %146 = arith.mulf %140, %140 : vector<16x1xf32>
    %147 = arith.subf %145, %146 : vector<16x1xf32>
    %c0_64 = arith.constant 0 : index
    %c0_65 = arith.constant 0 : index
    %148 = vector.load %arg10[%c0_64, %c0_65] : memref<16x1xf32, #tpu.memory_space<vmem>>, vector<16x1xf32>
    %cst_66 = arith.constant 9.99999974E-6 : f32
    %149 = vector.broadcast %cst_66 : f32 to vector<16x1xf32>
    %150 = arith.addf %147, %149 : vector<16x1xf32>
    %151 = math.rsqrt %150 : vector<16x1xf32>
    %152 = arith.mulf %148, %151 : vector<16x1xf32>
    %c0_67 = arith.constant 0 : index
    %c0_68 = arith.constant 0 : index
    %153 = vector.load %arg11[%c0_67, %c0_68] : memref<16x1xf32, #tpu.memory_space<vmem>>, vector<16x1xf32>
    %154 = arith.mulf %140, %152 : vector<16x1xf32>
    %155 = arith.subf %153, %154 : vector<16x1xf32>
    %156 = vector.broadcast %152 : vector<16x1xf32> to vector<16x256xf32>
    %157 = arith.mulf %136, %156 : vector<16x256xf32>
    %158 = vector.broadcast %155 : vector<16x1xf32> to vector<16x256xf32>
    %159 = arith.addf %157, %158 : vector<16x256xf32>
    %cst_69 = arith.constant 0.000000e+00 : f32
    %160 = vector.broadcast %cst_69 : f32 to vector<16x256xf32>
    %161 = arith.maximumf %159, %160 : vector<16x256xf32>
    %c1_i32_70 = arith.constant 1 : i32
    %162 = tpu.dynamic_rotate %161 by %c1_i32_70 dim 1 : vector<16x256xf32>, i32 -> vector<16x256xf32>
    %cst_71 = arith.constant 0.000000e+00 : f32
    %163 = vector.broadcast %cst_71 : f32 to vector<16x256xf32>
    %164 = arith.select %30, %162, %163 : vector<16x256xi1>, vector<16x256xf32>
    %c255_i32_72 = arith.constant 255 : i32
    %165 = tpu.dynamic_rotate %161 by %c255_i32_72 dim 1 : vector<16x256xf32>, i32 -> vector<16x256xf32>
    %cst_73 = arith.constant 0.000000e+00 : f32
    %166 = vector.broadcast %cst_73 : f32 to vector<16x256xf32>
    %167 = arith.select %32, %165, %166 : vector<16x256xi1>, vector<16x256xf32>
    %168 = tpu.concatenate %164, %161, %167 in 0 : vector<16x256xf32>, vector<16x256xf32>, vector<16x256xf32> -> vector<48x256xf32>
    %c0_74 = arith.constant 0 : index
    %c0_75 = arith.constant 0 : index
    %169 = vector.load %arg12[%c0_74, %c0_75] : memref<16x48xf32, #tpu.memory_space<vmem>>, vector<16x48xf32>
    %cst_76 = arith.constant dense<0.000000e+00> : vector<16x256xf32>
    %170 = tpu.matmul %169, %168, %cst_76 {dimension_numbers = #tpu.dot_dimension_numbers<[1], [0], [0], [1], [0, 0, 1, 1], [], []>} : vector<16x48xf32>, vector<48x256xf32>, vector<16x256xf32> -> vector<16x256xf32>
    %cst_77 = arith.constant dense<0.000000e+00> : vector<16xf32>
    %171 = vector.multi_reduction <add>, %170, %cst_77 [1] : vector<16x256xf32> to vector<16xf32>
    %172 = vector.shape_cast %171 : vector<16xf32> to vector<16x1xf32>
    %cst_78 = arith.constant 2.560000e+02 : f32
    %173 = vector.broadcast %cst_78 : f32 to vector<16x1xf32>
    %174 = arith.divf %172, %173 : vector<16x1xf32>
    %175 = arith.mulf %170, %170 : vector<16x256xf32>
    %cst_79 = arith.constant dense<0.000000e+00> : vector<16xf32>
    %176 = vector.multi_reduction <add>, %175, %cst_79 [1] : vector<16x256xf32> to vector<16xf32>
    %177 = vector.shape_cast %176 : vector<16xf32> to vector<16x1xf32>
    %cst_80 = arith.constant 2.560000e+02 : f32
    %178 = vector.broadcast %cst_80 : f32 to vector<16x1xf32>
    %179 = arith.divf %177, %178 : vector<16x1xf32>
    %180 = arith.mulf %174, %174 : vector<16x1xf32>
    %181 = arith.subf %179, %180 : vector<16x1xf32>
    %c0_81 = arith.constant 0 : index
    %c0_82 = arith.constant 0 : index
    %182 = vector.load %arg13[%c0_81, %c0_82] : memref<16x1xf32, #tpu.memory_space<vmem>>, vector<16x1xf32>
    %cst_83 = arith.constant 9.99999974E-6 : f32
    %183 = vector.broadcast %cst_83 : f32 to vector<16x1xf32>
    %184 = arith.addf %181, %183 : vector<16x1xf32>
    %185 = math.rsqrt %184 : vector<16x1xf32>
    %186 = arith.mulf %182, %185 : vector<16x1xf32>
    %c0_84 = arith.constant 0 : index
    %c0_85 = arith.constant 0 : index
    %187 = vector.load %arg14[%c0_84, %c0_85] : memref<16x1xf32, #tpu.memory_space<vmem>>, vector<16x1xf32>
    %188 = arith.mulf %174, %186 : vector<16x1xf32>
    %189 = arith.subf %187, %188 : vector<16x1xf32>
    %190 = vector.broadcast %186 : vector<16x1xf32> to vector<16x256xf32>
    %191 = arith.mulf %170, %190 : vector<16x256xf32>
    %192 = vector.broadcast %189 : vector<16x1xf32> to vector<16x256xf32>
    %193 = arith.addf %191, %192 : vector<16x256xf32>
    %194 = arith.addf %127, %193 : vector<16x256xf32>
    %c0_86 = arith.constant 0 : index
    %c0_87 = arith.constant 0 : index
    %195 = vector.load %arg15[%c0_86, %c0_87] : memref<8x16xf32, #tpu.memory_space<vmem>>, vector<8x16xf32>
    %cst_88 = arith.constant dense<0.000000e+00> : vector<8x256xf32>
    %196 = tpu.matmul %195, %194, %cst_88 {dimension_numbers = #tpu.dot_dimension_numbers<[1], [0], [0], [1], [0, 0, 1, 1], [], []>} : vector<8x16xf32>, vector<16x256xf32>, vector<8x256xf32> -> vector<8x256xf32>
    %197 = vector.extract_strided_slice %196 {offsets = [0, 0], sizes = [1, 256], strides = [1, 1]} : vector<8x256xf32> to vector<1x256xf32>
    %c3_i32_89 = arith.constant 3 : i32
    %198 = tpu.dynamic_rotate %197 by %c3_i32_89 dim 1 : vector<1x256xf32>, i32 -> vector<1x256xf32>
    %cst_90 = arith.constant 0.000000e+00 : f32
    %199 = vector.broadcast %cst_90 : f32 to vector<1x256xf32>
    %200 = arith.select %18, %198, %199 : vector<1x256xi1>, vector<1x256xf32>
    %201 = vector.extract_strided_slice %196 {offsets = [1, 0], sizes = [1, 256], strides = [1, 1]} : vector<8x256xf32> to vector<1x256xf32>
    %c2_i32_91 = arith.constant 2 : i32
    %202 = tpu.dynamic_rotate %201 by %c2_i32_91 dim 1 : vector<1x256xf32>, i32 -> vector<1x256xf32>
    %cst_92 = arith.constant 0.000000e+00 : f32
    %203 = vector.broadcast %cst_92 : f32 to vector<1x256xf32>
    %204 = arith.select %20, %202, %203 : vector<1x256xi1>, vector<1x256xf32>
    %205 = arith.addf %200, %204 : vector<1x256xf32>
    %206 = vector.extract_strided_slice %196 {offsets = [2, 0], sizes = [1, 256], strides = [1, 1]} : vector<8x256xf32> to vector<1x256xf32>
    %c1_i32_93 = arith.constant 1 : i32
    %207 = tpu.dynamic_rotate %206 by %c1_i32_93 dim 1 : vector<1x256xf32>, i32 -> vector<1x256xf32>
    %cst_94 = arith.constant 0.000000e+00 : f32
    %208 = vector.broadcast %cst_94 : f32 to vector<1x256xf32>
    %209 = arith.select %22, %207, %208 : vector<1x256xi1>, vector<1x256xf32>
    %210 = arith.addf %205, %209 : vector<1x256xf32>
    %211 = vector.extract_strided_slice %196 {offsets = [3, 0], sizes = [1, 256], strides = [1, 1]} : vector<8x256xf32> to vector<1x256xf32>
    %212 = arith.addf %210, %211 : vector<1x256xf32>
    %213 = vector.extract_strided_slice %196 {offsets = [4, 0], sizes = [1, 256], strides = [1, 1]} : vector<8x256xf32> to vector<1x256xf32>
    %c255_i32_95 = arith.constant 255 : i32
    %214 = tpu.dynamic_rotate %213 by %c255_i32_95 dim 1 : vector<1x256xf32>, i32 -> vector<1x256xf32>
    %cst_96 = arith.constant 0.000000e+00 : f32
    %215 = vector.broadcast %cst_96 : f32 to vector<1x256xf32>
    %216 = arith.select %24, %214, %215 : vector<1x256xi1>, vector<1x256xf32>
    %217 = arith.addf %212, %216 : vector<1x256xf32>
    %218 = vector.extract_strided_slice %196 {offsets = [5, 0], sizes = [1, 256], strides = [1, 1]} : vector<8x256xf32> to vector<1x256xf32>
    %c254_i32_97 = arith.constant 254 : i32
    %219 = tpu.dynamic_rotate %218 by %c254_i32_97 dim 1 : vector<1x256xf32>, i32 -> vector<1x256xf32>
    %cst_98 = arith.constant 0.000000e+00 : f32
    %220 = vector.broadcast %cst_98 : f32 to vector<1x256xf32>
    %221 = arith.select %26, %219, %220 : vector<1x256xi1>, vector<1x256xf32>
    %222 = arith.addf %217, %221 : vector<1x256xf32>
    %223 = vector.extract_strided_slice %196 {offsets = [6, 0], sizes = [1, 256], strides = [1, 1]} : vector<8x256xf32> to vector<1x256xf32>
    %c253_i32_99 = arith.constant 253 : i32
    %224 = tpu.dynamic_rotate %223 by %c253_i32_99 dim 1 : vector<1x256xf32>, i32 -> vector<1x256xf32>
    %cst_100 = arith.constant 0.000000e+00 : f32
    %225 = vector.broadcast %cst_100 : f32 to vector<1x256xf32>
    %226 = arith.select %28, %224, %225 : vector<1x256xi1>, vector<1x256xf32>
    %227 = arith.addf %222, %226 : vector<1x256xf32>
    %c0_101 = arith.constant 0 : index
    %c0_102 = arith.constant 0 : index
    %228 = vector.load %arg16[%c0_101, %c0_102] : memref<1x1xf32, #tpu.memory_space<vmem>>, vector<1x1xf32>
    %229 = vector.broadcast %228 : vector<1x1xf32> to vector<1x256xf32>
    %230 = arith.addf %227, %229 : vector<1x256xf32>
    %231 = math.tanh %230 : vector<1x256xf32>
    %c0_103 = arith.constant 0 : index
    %c0_104 = arith.constant 0 : index
    %232 = vector.load %arg17[%c0_103, %c0_104] : memref<1x256xf32, #tpu.memory_space<vmem>>, vector<1x256xf32>
    tpu.vector_store %arg17[%c0_103, %c0_104], %231 {strides = array<i32>} : memref<1x256xf32, #tpu.memory_space<vmem>>, vector<1x256xf32>,
    return
  }
}

</mosaic_0001>

<llo_original>
// kernel: generator_forward.1
$region0: #{generator_forward.1}
  #allocation0 [shape = 'u32[]', space=smem, size = 0x4, offset = 0x4, fixed_abs, tag = 'smem constant byte address 0x4 - core index']
  #allocation1 [shape = 'u32[144,128]{1,0:T(1,128)}', space=vmem, size = 0x12000, scoped, tag = 'internal scratch']
  #allocation2 [shape = 'f32[1,1]{1,0:T(1,128)S(1)}', space=vmem, size = 0x200, scoped, tag = 'scoped memory for generator_forward.1']
  %s0 = inlined_call_operand.vmem [shape: f32[1,256], index: 0, kind: input, shape index: {}]
  %s1 = inlined_call_operand.vmem [shape: f32[16,8], index: 1, kind: input, shape index: {}]
  %s2 = inlined_call_operand.vmem [shape: f32[16,1], index: 2, kind: input, shape index: {}]
  %s3 = inlined_call_operand.vmem [shape: f32[16,48], index: 3, kind: input, shape index: {}]
  %s4 = inlined_call_operand.vmem [shape: f32[16,1], index: 4, kind: input, shape index: {}]
  %s5 = inlined_call_operand.vmem [shape: f32[16,1], index: 5, kind: input, shape index: {}]
  %s6 = inlined_call_operand.vmem [shape: f32[16,48], index: 6, kind: input, shape index: {}]
  %s7 = inlined_call_operand.vmem [shape: f32[16,1], index: 7, kind: input, shape index: {}]
  %s8 = inlined_call_operand.vmem [shape: f32[16,1], index: 8, kind: input, shape index: {}]
  %s9 = inlined_call_operand.vmem [shape: f32[16,48], index: 9, kind: input, shape index: {}]
  %s10 = inlined_call_operand.vmem [shape: f32[16,1], index: 10, kind: input, shape index: {}]
  %s11 = inlined_call_operand.vmem [shape: f32[16,1], index: 11, kind: input, shape index: {}]
  %s12 = inlined_call_operand.vmem [shape: f32[16,48], index: 12, kind: input, shape index: {}]
  %s13 = inlined_call_operand.vmem [shape: f32[16,1], index: 13, kind: input, shape index: {}]
  %s14 = inlined_call_operand.vmem [shape: f32[16,1], index: 14, kind: input, shape index: {}]
  %s15 = inlined_call_operand.vmem [shape: f32[8,16], index: 15, kind: input, shape index: {}]
  %s16 = inlined_call_operand.<no memory space> [shape: f32[1,1], index: 16, kind: input, shape index: {}]
  %s17 = inlined_call_operand.hbm [shape: f32[1,256], index: 17, kind: output, shape index: {}]
  %s18 = sld [smem:[#allocation0]]
  $region78: #{generator_forward.1} parent=0
    _
  %s20 = ssub.s32 1, %s18
  %s21 = scalar_select 0, %s20, %s18
  %v22 = vstv %s16
  %23 = vst [vmem:[#allocation2] sm:$0x1] %v22
  $region1: #{generator_forward.1} parent=0
    #allocation3 [shape = 'u8[1024]{0}', space=vmem, size = 0x400, scoped, tag = 'output window, operand 0, single buffered']
    #allocation4 [shape = 's32[1]{0}', space=sflag, size = 0x4, scoped, tag = 'scoped memory for generator_forward.1']
    %24 = vsyncpa [#allocation4], 0
    // Predicated region
    $region2: #{generator_forward.1} parent=1 // pred_check
      _
    $region3: #{generator_forward.1} parent=1 // pred_check_branch
      %26 = sbr.rel (0) target = $region5
    $region4: #{generator_forward.1} parent=1 // pred_region
      _
    $region5: #{generator_forward.1} parent=1 // pred_fallthru
      _
    // Predicated region
    $region6: #{generator_forward.1} parent=1 // pred_check
      _
    $region7: #{generator_forward.1} parent=1 // pred_check_branch
      %28 = sbr.rel (0) target = $region9
    $region8: #{generator_forward.1} parent=1 // pred_region
      _
    $region9: #{generator_forward.1} parent=1 // pred_fallthru
      _
    // Predicated region
    $region10: #{generator_forward.1} parent=1 // pred_check
      _
    $region11: #{generator_forward.1} parent=1 // pred_check_branch
      %30 = sbr.rel (0) target = $region13
    $region12: #{generator_forward.1} parent=1 // pred_region
      _
    $region13: #{generator_forward.1} parent=1 // pred_fallthru
      _
    // Predicated region
    $region14: #{generator_forward.1} parent=1 // pred_check
      _
    $region15: #{generator_forward.1} parent=1 // pred_check_branch
      %32 = sbr.rel (0) target = $region17
    $region16: #{generator_forward.1} parent=1 // pred_region
      _
    $region17: #{generator_forward.1} parent=1 // pred_fallthru
      _
    // Predicated region
    $region18: #{generator_forward.1} parent=1 // pred_check
      _
    $region19: #{generator_forward.1} parent=1 // pred_check_branch
      %34 = sbr.rel (0) target = $region21
    $region20: #{generator_forward.1} parent=1 // pred_region
      _
    $region21: #{generator_forward.1} parent=1 // pred_fallthru
      _
    // Predicated region
    $region22: #{generator_forward.1} parent=1 // pred_check
      _
    $region23: #{generator_forward.1} parent=1 // pred_check_branch
      %36 = sbr.rel (0) target = $region25
    $region24: #{generator_forward.1} parent=1 // pred_region
      _
    $region25: #{generator_forward.1} parent=1 // pred_fallthru
      _
    // Predicated region
    $region26: #{generator_forward.1} parent=1 // pred_check
      _
    $region27: #{generator_forward.1} parent=1 // pred_check_branch
      %38 = sbr.rel (0) target = $region29
    $region28: #{generator_forward.1} parent=1 // pred_region
      _
    $region29: #{generator_forward.1} parent=1 // pred_fallthru
      _
    // Predicated region
    $region30: #{generator_forward.1} parent=1 // pred_check
      _
    $region31: #{generator_forward.1} parent=1 // pred_check_branch
      %40 = sbr.rel (0) target = $region33
    $region32: #{generator_forward.1} parent=1 // pred_region
      _
    $region33: #{generator_forward.1} parent=1 // pred_fallthru
      _
    // Predicated region
    $region34: #{generator_forward.1} parent=1 // pred_check
      _
    $region35: #{generator_forward.1} parent=1 // pred_check_branch
      %42 = sbr.rel (0) target = $region37
    $region36: #{generator_forward.1} parent=1 // pred_region
      _
    $region37: #{generator_forward.1} parent=1 // pred_fallthru
      _
    // Predicated region
    $region38: #{generator_forward.1} parent=1 // pred_check
      _
    $region39: #{generator_forward.1} parent=1 // pred_check_branch
      %44 = sbr.rel (0) target = $region41
    $region40: #{generator_forward.1} parent=1 // pred_region
      _
    $region41: #{generator_forward.1} parent=1 // pred_fallthru
      _
    // Predicated region
    $region42: #{generator_forward.1} parent=1 // pred_check
      _
    $region43: #{generator_forward.1} parent=1 // pred_check_branch
      %46 = sbr.rel (0) target = $region45
    $region44: #{generator_forward.1} parent=1 // pred_region
      _
    $region45: #{generator_forward.1} parent=1 // pred_fallthru
      _
    // Predicated region
    $region46: #{generator_forward.1} parent=1 // pred_check
      _
    $region47: #{generator_forward.1} parent=1 // pred_check_branch
      %48 = sbr.rel (0) target = $region49
    $region48: #{generator_forward.1} parent=1 // pred_region
      _
    $region49: #{generator_forward.1} parent=1 // pred_fallthru
      _
    // Predicated region
    $region50: #{generator_forward.1} parent=1 // pred_check
      _
    $region51: #{generator_forward.1} parent=1 // pred_check_branch
      %50 = sbr.rel (0) target = $region53
    $region52: #{generator_forward.1} parent=1 // pred_region
      _
    $region53: #{generator_forward.1} parent=1 // pred_fallthru
      _
    // Predicated region
    $region54: #{generator_forward.1} parent=1 // pred_check
      _
    $region55: #{generator_forward.1} parent=1 // pred_check_branch
      %52 = sbr.rel (0) target = $region57
    $region56: #{generator_forward.1} parent=1 // pred_region
      _
    $region57: #{generator_forward.1} parent=1 // pred_fallthru
      _
    // Predicated region
    $region58: #{generator_forward.1} parent=1 // pred_check
      _
    $region59: #{generator_forward.1} parent=1 // pred_check_branch
      %54 = sbr.rel (0) target = $region61
    $region60: #{generator_forward.1} parent=1 // pred_region
      _
    $region61: #{generator_forward.1} parent=1 // pred_fallthru
      _
    // Predicated region
    $region62: #{generator_forward.1} parent=1 // pred_check
      _
    $region63: #{generator_forward.1} parent=1 // pred_check_branch
      %56 = sbr.rel (0) target = $region65
    $region64: #{generator_forward.1} parent=1 // pred_region
      _
    $region65: #{generator_forward.1} parent=1 // pred_fallthru
      _
    // Predicated region
    $region66: #{generator_forward.1} parent=1 // pred_check
      _
    $region67: #{generator_forward.1} parent=1 // pred_check_branch
      %58 = sbr.rel (0) target = $region69
    $region68: #{generator_forward.1} parent=1 // pred_region
      _
    $region69: #{generator_forward.1} parent=1 // pred_fallthru
      _
    %v59 = vlaneseq
    %v60 = vand.u32 %v59, 127
    %v61 = vadd.s32 %v60, 128
    %vm62 = vcmp.lt.s32.totalorder %v60, 0
    %v63 = vsub.s32 0, %v60
    %v64 = vsel %vm62, %v63, %v60
    %v65 = vshrl.u32 %v64, 7
    %v66 = vand.u32 %v64, 127
    %v67 = vsub.s32 0, %v66
    %v68 = vsel %vm62, %v67, %v66
    %vm69 = vcmp.lt.s32.totalorder %v61, 0
    %v70 = vsub.s32 0, %v61
    %v71 = vsel %vm69, %v70, %v61
    %v72 = vshrl.u32 %v71, 7
    %v73 = vand.u32 %v71, 127
    %v74 = vsub.s32 0, %v73
    %v75 = vsel %vm69, %v74, %v73
    %vm76 = vcmp.ne.s32.totalorder %v68, 0
    %vm77 = vcmp.ne.s32.totalorder %v75, 0
    %vm78 = vcmp.lt.s32.totalorder %v68, 0
    %vm79 = vcmp.lt.s32.totalorder %v75, 0
    %vm80 = vmand %vm78, %vm76
    %vm81 = vmand %vm79, %vm77
    %v82 = vadd.s32 %v68, 128
    %v83 = vadd.s32 %v75, 128
    %v84 = vsel %vm80, %v82, %v68
    %v85 = vsel %vm81, %v83, %v75
    %vm86 = vcmp.ge.s32.totalorder %v84, 3
    %vm87 = vcmp.ge.s32.totalorder %v85, 3
    %vm88 = vcmp.ge.s32.totalorder %v84, 2
    %vm89 = vcmp.ge.s32.totalorder %v85, 2
    %vm90 = vcmp.ge.s32.totalorder %v84, 1
    %vm91 = vcmp.ge.s32.totalorder %v85, 1
    %vm92 = vcmp.lt.s32.totalorder %v84, 127
    %vm93 = vcmp.lt.s32.totalorder %v85, 127
    %vm94 = vcmp.lt.s32.totalorder %v84, 126
    %vm95 = vcmp.lt.s32.totalorder %v85, 126
    %vm96 = vcmp.lt.s32.totalorder %v84, 125
    %vm97 = vcmp.lt.s32.totalorder %v85, 125
    %v98 = vsel %vm90, 1, 0
    %v99 = vsel %vm91, 1, 0
    %vm100 = vcmp.eq.s32.totalorder %v98, 1
    %vm101 = vcmp.eq.s32.totalorder %v99, 1
    %v102 = vsel %vm92, 1, 0
    %v103 = vsel %vm93, 1, 0
    %vm104 = vcmp.eq.s32.totalorder %v102, 1
    %vm105 = vcmp.eq.s32.totalorder %v103, 1
    %v106 = vld [vmem:[%s0] sm:$0x3]
    %v108 = vlaneseq
    %v109 = vshrl.u32 %v108, 7
    %v110 = vsub.s32 0, %v109
    %v111 = vrot.slane %v106, %v110
    %v112 = vlaneseq
    %v113 = vshrl.u32 %v112, 7
    %v114 = vsub.s32 1, %v113
    %v115 = vrot.slane %v106, %v114
    %118 = vrot.lane.b32.xlu0 %v111, 3
    %v119 = vpop.permute.xlu0 %118
    %120 = vrot.lane.b32.xlu0 %v115, 3
    %v121 = vpop.permute.xlu0 %120
    %vm122 = vcmp.lt.s32.totalorder %v60, 3
    %v123 = vsel %vm122, %v119, %v121
    %v124 = vsel %vm122, %v121, %v119
    %v125 = vsel %vm86, %v124, 0.0
    %v126 = vsel %vm87, %v123, 0.0
    %127 = vrot.lane.b32.xlu0 %v111, 2
    %v128 = vpop.permute.xlu0 %127
    %129 = vrot.lane.b32.xlu0 %v115, 2
    %v130 = vpop.permute.xlu0 %129
    %vm131 = vcmp.lt.s32.totalorder %v60, 2
    %v132 = vsel %vm131, %v128, %v130
    %v133 = vsel %vm131, %v130, %v128
    %v134 = vsel %vm88, %v133, 0.0
    %v135 = vsel %vm89, %v132, 0.0
    %136 = vrot.lane.b32.xlu0 %v111, 1
    %v137 = vpop.permute.xlu0 %136
    %138 = vrot.lane.b32.xlu0 %v115, 1
    %v139 = vpop.permute.xlu0 %138
    %vm140 = vcmp.lt.s32.totalorder %v60, 1
    %v141 = vsel %vm140, %v137, %v139
    %v142 = vsel %vm140, %v139, %v137
    %v143 = vsel %vm90, %v142, 0.0
    %v144 = vsel %vm91, %v141, 0.0
    %145 = vrot.lane.b32.xlu0 %v111, 127
    %v146 = vpop.permute.xlu0 %145
    %147 = vrot.lane.b32.xlu0 %v115, 127
    %v148 = vpop.permute.xlu0 %147
    %vm149 = vcmp.lt.s32.totalorder %v60, 127
    %v150 = vsel %vm149, %v146, %v148
    %v151 = vsel %vm149, %v148, %v146
    %v152 = vsel %vm92, %v150, 0.0
    %v153 = vsel %vm93, %v151, 0.0
    %154 = vrot.lane.b32.xlu0 %v111, 126
    %v155 = vpop.permute.xlu0 %154
    %156 = vrot.lane.b32.xlu0 %v115, 126
    %v157 = vpop.permute.xlu0 %156
    %vm158 = vcmp.lt.s32.totalorder %v60, 126
    %v159 = vsel %vm158, %v155, %v157
    %v160 = vsel %vm158, %v157, %v155
    %v161 = vsel %vm94, %v159, 0.0
    %v162 = vsel %vm95, %v160, 0.0
    %163 = vrot.lane.b32.xlu0 %v111, 125
    %v164 = vpop.permute.xlu0 %163
    %165 = vrot.lane.b32.xlu0 %v115, 125
    %v166 = vpop.permute.xlu0 %165
    %vm167 = vcmp.lt.s32.totalorder %v60, 125
    %v168 = vsel %vm167, %v164, %v166
    %v169 = vsel %vm167, %v166, %v164
    %v170 = vsel %vm96, %v168, 0.0
    %v171 = vsel %vm97, %v169, 0.0
    %v174 = vrot.slane %v134, 7
    %v175 = vrot.slane %v135, 7
    %v180 = vrot.slane %v143, 6
    %v181 = vrot.slane %v144, 6
    %v186 = vrot.slane %v152, 4
    %v187 = vrot.slane %v153, 4
    %v192 = vrot.slane %v161, 3
    %v193 = vrot.slane %v162, 3
    %v198 = vrot.slane %v170, 2
    %v199 = vrot.slane %v171, 2
    %vm202 = vcmask 1040384
    %v203 = vsel %vm202, %v125, %v174
    %v204 = vsel %vm202, %v126, %v175
    %vm205 = vcmask 1041408
    %v206 = vsel %vm205, %v203, %v180
    %v207 = vsel %vm205, %v204, %v181
    %vm208 = vcmask 1042432
    %v209 = vsel %vm208, %v206, %v111
    %v210 = vsel %vm208, %v207, %v115
    %vm211 = vcmask 1043456
    %v212 = vsel %vm211, %v209, %v186
    %v213 = vsel %vm211, %v210, %v187
    %vm214 = vcmask 1044480
    %v215 = vsel %vm214, %v212, %v192
    %v216 = vsel %vm214, %v213, %v193
    %vm217 = vcmask 1045504
    %v218 = vsel %vm217, %v215, %v198
    %v219 = vsel %vm217, %v216, %v199
    %vm220 = vcmask 1046528
    %v221 = vsel %vm220, %v218, 0.0
    %v222 = vsel %vm220, %v219, 0.0
    %v223 = vld [vmem:[%s1] sm:$0xff]
    %v224 = vld [vmem:[%s1 + $0x8] sm:$0xff]
    %v225 = vld [vmem:[%s2] sm:$0xff]
    %v226 = vld [vmem:[%s2 + $0x8] sm:$0xff]
    %228 = vset.pattern.permute.xlu0 0
    %229 = vperm.xlu0 %228, %v225
    %v230 = vpop.permute.xlu0 %229
    %233 = vset.pattern.permute.xlu0 0
    %234 = vperm.xlu0 %233, %v226
    %v235 = vpop.permute.xlu0 %234
    %vm237 = vcmask 64512
    %v239 = vsel %vm237, %v223, 0
    %v242 = vsel %vm237, %v224, 0
    %244 = vmatprep.subr.mxu0 0.0
    %245 = vmatpush1.msra.mxu0 0.0
    %246 = vmatprep.subr.mxu0 0.0
    %247 = vmatpush1.msra.mxu0 0.0
    %248 = vmatprep.subr.mxu0 0.0
    %249 = vmatpush1.msra.mxu0 0.0
    %250 = vmatprep.subr.mxu0 0.0
    %251 = vmatpush1.msra.mxu0 0.0
    %252 = vmatprep.subr.mxu0 0.0
    %253 = vmatpush1.msra.mxu0 0.0
    %254 = vmatprep.subr.mxu0 0.0
    %255 = vmatpush1.msra.mxu0 0.0
    %256 = vmatprep.subr.mxu0 0.0
    %257 = vmatpush1.msra.mxu0 0.0
    %258 = vmatprep.subr.mxu0 0.0
    %259 = vmatpush1.msra.mxu0 0.0
    %260 = vmatprep.subr.mxu0 0.0
    %261 = vmatpush1.msra.mxu0 0.0
    %262 = vmatprep.subr.mxu0 0.0
    %263 = vmatpush1.msra.mxu0 0.0
    %264 = vmatprep.subr.mxu0 0.0
    %265 = vmatpush1.msra.mxu0 0.0
    %266 = vmatprep.subr.mxu0 0.0
    %267 = vmatpush1.msra.mxu0 0.0
    %268 = vmatprep.subr.mxu0 0.0
    %269 = vmatpush1.msra.mxu0 0.0
    %270 = vmatprep.subr.mxu0 0.0
    %271 = vmatpush1.msra.mxu0 0.0
    %272 = vmatprep.subr.mxu0 0.0
    %273 = vmatpush1.msra.mxu0 0.0
    %274 = vmatprep.subr.mxu0 %v222
    %275 = vmatpush1.msra.mxu0 %v221
    %276 = vmatprep.subr.mxu0 0.0
    %277 = vmatpush2.msra.mxu0 0.0
    %278 = vmatprep.subr.mxu0 0.0
    %279 = vmatpush2.msra.mxu0 0.0
    %280 = vmatprep.subr.mxu0 0.0
    %281 = vmatpush2.msra.mxu0 0.0
    %282 = vmatprep.subr.mxu0 0.0
    %283 = vmatpush2.msra.mxu0 0.0
    %284 = vmatprep.subr.mxu0 0.0
    %285 = vmatpush2.msra.mxu0 0.0
    %286 = vmatprep.subr.mxu0 0.0
    %287 = vmatpush2.msra.mxu0 0.0
    %288 = vmatprep.subr.mxu0 0.0
    %289 = vmatpush2.msra.mxu0 0.0
    %290 = vmatprep.subr.mxu0 0.0
    %291 = vmatpush2.msra.mxu0 0.0
    %292 = vmatprep.subr.mxu0 0.0
    %293 = vmatpush2.msra.mxu0 0.0
    %294 = vmatprep.subr.mxu0 0.0
    %295 = vmatpush2.msra.mxu0 0.0
    %296 = vmatprep.subr.mxu0 0.0
    %297 = vmatpush2.msra.mxu0 0.0
    %298 = vmatprep.subr.mxu0 0.0
    %299 = vmatpush2.msra.mxu0 0.0
    %300 = vmatprep.subr.mxu0 0.0
    %301 = vmatpush2.msra.mxu0 0.0
    %302 = vmatprep.subr.mxu0 0.0
    %303 = vmatpush2.msra.mxu0 0.0
    %304 = vmatprep.subr.mxu0 0.0
    %305 = vmatpush2.msra.mxu0 0.0
    %306 = vmatprep.subr.mxu0 0.0
    %307 = vmatpush2.msra.mxu0 0.0
    %308 = vmatprep.mubr.f32.mxu0 0.0
    %309 = vmatmul.mubr.f32.gmra.mxu0 %v239
    %v310 = vpop.f32.mrf.mxu0
    %v311 = vadd.f32 %v230, %v310
    %v312 = vpop.f32.mrf.mxu0
    %v313 = vadd.f32 %v230, %v312
    %314 = vmatprep.mubr.f32.mxu0 0.0
    %315 = vmatmul.mubr.f32.gmra.mxu0 %v242
    %v316 = vpop.f32.mrf.mxu0
    %v317 = vadd.f32 %v235, %v316
    %v318 = vpop.f32.mrf.mxu0
    %v319 = vadd.f32 %v235, %v318
    %320 = vdwg.mxu0
    %v321 = vmax.f32 %v311, 0.0
    %v322 = vmax.f32 %v313, 0.0
    %v323 = vmax.f32 %v317, 0.0
    %v324 = vmax.f32 %v319, 0.0
    %325 = vrot.lane.b32.xlu0 %v321, 1
    %v326 = vpop.permute.xlu0 %325
    %327 = vrot.lane.b32.xlu0 %v323, 1
    %v328 = vpop.permute.xlu0 %327
    %329 = vrot.lane.b32.xlu0 %v322, 1
    %v330 = vpop.permute.xlu0 %329
    %331 = vrot.lane.b32.xlu0 %v324, 1
    %v332 = vpop.permute.xlu0 %331
    %v333 = vsel %vm140, %v326, %v330
    %v334 = vsel %vm140, %v328, %v332
    %v335 = vsel %vm140, %v330, %v326
    %v336 = vsel %vm140, %v332, %v328
    %v337 = vsel %vm100, %v335, 0.0
    %v338 = vsel %vm101, %v333, 0.0
    %v339 = vsel %vm100, %v336, 0.0
    %v340 = vsel %vm101, %v334, 0.0
    %341 = vrot.lane.b32.xlu0 %v321, 127
    %v342 = vpop.permute.xlu0 %341
    %343 = vrot.lane.b32.xlu0 %v323, 127
    %v344 = vpop.permute.xlu0 %343
    %345 = vrot.lane.b32.xlu0 %v322, 127
    %v346 = vpop.permute.xlu0 %345
    %347 = vrot.lane.b32.xlu0 %v324, 127
    %v348 = vpop.permute.xlu0 %347
    %v349 = vsel %vm149, %v342, %v346
    %v350 = vsel %vm149, %v344, %v348
    %v351 = vsel %vm149, %v346, %v342
    %v352 = vsel %vm149, %v348, %v344
    %v353 = vsel %vm104, %v349, 0.0
    %v354 = vsel %vm105, %v351, 0.0
    %v355 = vsel %vm104, %v350, 0.0
    %v356 = vsel %vm105, %v352, 0.0
    %v357 = vld [vmem:[%s3] sm:$0xff]
    %v358 = vld [vmem:[%s3 + $0x8] sm:$0xff]
    %vm359 = vcmask 392192
    %v361 = vsel %vm359, %v357, 0
    %v364 = vsel %vm359, %v358, 0
    %366 = vmatprep.subr.mxu0 0.0
    %367 = vmatpush1.msra.mxu0 0.0
    %368 = vmatprep.subr.mxu0 0.0
    %369 = vmatpush1.msra.mxu0 0.0
    %370 = vmatprep.subr.mxu0 0.0
    %371 = vmatpush1.msra.mxu0 0.0
    %372 = vmatprep.subr.mxu0 0.0
    %373 = vmatpush1.msra.mxu0 0.0
    %374 = vmatprep.subr.mxu0 0.0
    %375 = vmatpush1.msra.mxu0 0.0
    %376 = vmatprep.subr.mxu0 0.0
    %377 = vmatpush1.msra.mxu0 0.0
    %378 = vmatprep.subr.mxu0 0.0
    %379 = vmatpush1.msra.mxu0 0.0
    %380 = vmatprep.subr.mxu0 0.0
    %381 = vmatpush1.msra.mxu0 0.0
    %382 = vmatprep.subr.mxu0 0.0
    %383 = vmatpush1.msra.mxu0 0.0
    %384 = vmatprep.subr.mxu0 0.0
    %385 = vmatpush1.msra.mxu0 0.0
    %386 = vmatprep.subr.mxu0 %v356
    %387 = vmatpush1.msra.mxu0 %v355
    %388 = vmatprep.subr.mxu0 %v354
    %389 = vmatpush1.msra.mxu0 %v353
    %390 = vmatprep.subr.mxu0 %v324
    %391 = vmatpush1.msra.mxu0 %v323
    %392 = vmatprep.subr.mxu0 %v322
    %393 = vmatpush1.msra.mxu0 %v321
    %394 = vmatprep.subr.mxu0 %v340
    %395 = vmatpush1.msra.mxu0 %v339
    %396 = vmatprep.subr.mxu0 %v338
    %397 = vmatpush1.msra.mxu0 %v337
    %398 = vmatprep.subr.mxu0 0.0
    %399 = vmatpush2.msra.mxu0 0.0
    %400 = vmatprep.subr.mxu0 0.0
    %401 = vmatpush2.msra.mxu0 0.0
    %402 = vmatprep.subr.mxu0 0.0
    %403 = vmatpush2.msra.mxu0 0.0
    %404 = vmatprep.subr.mxu0 0.0
    %405 = vmatpush2.msra.mxu0 0.0
    %406 = vmatprep.subr.mxu0 0.0
    %407 = vmatpush2.msra.mxu0 0.0
    %408 = vmatprep.subr.mxu0 0.0
    %409 = vmatpush2.msra.mxu0 0.0
    %410 = vmatprep.subr.mxu0 0.0
    %411 = vmatpush2.msra.mxu0 0.0
    %412 = vmatprep.subr.mxu0 0.0
    %413 = vmatpush2.msra.mxu0 0.0
    %414 = vmatprep.subr.mxu0 0.0
    %415 = vmatpush2.msra.mxu0 0.0
    %416 = vmatprep.subr.mxu0 0.0
    %417 = vmatpush2.msra.mxu0 0.0
    %418 = vmatprep.subr.mxu0 0.0
    %419 = vmatpush2.msra.mxu0 0.0
    %420 = vmatprep.subr.mxu0 0.0
    %421 = vmatpush2.msra.mxu0 0.0
    %422 = vmatprep.subr.mxu0 0.0
    %423 = vmatpush2.msra.mxu0 0.0
    %424 = vmatprep.subr.mxu0 0.0
    %425 = vmatpush2.msra.mxu0 0.0
    %426 = vmatprep.subr.mxu0 0.0
    %427 = vmatpush2.msra.mxu0 0.0
    %428 = vmatprep.subr.mxu0 0.0
    %429 = vmatpush2.msra.mxu0 0.0
    %430 = vmatprep.mubr.f32.mxu0 0.0
    %431 = vmatmul.mubr.f32.gmra.mxu0 %v361
    %v432 = vpop.f32.mrf.mxu0
    %v433 = vadd.f32 0.0, %v432
    %v434 = vpop.f32.mrf.mxu0
    %v435 = vadd.f32 0.0, %v434
    %436 = vmatprep.mubr.f32.mxu0 0.0
    %437 = vmatmul.mubr.f32.gmra.mxu0 %v364
    %v438 = vpop.f32.mrf.mxu0
    %v439 = vadd.f32 0.0, %v438
    %v440 = vpop.f32.mrf.mxu0
    %v441 = vadd.f32 0.0, %v440
    %442 = vdwg.mxu0
    %v443 = vadd.f32 %v433, %v435
    %444 = vadd.xlane.f32.xlu0 %v443
    %v445 = vpop.xlane.xlu0 %444
    %v446 = vadd.f32 %v439, %v441
    %447 = vadd.xlane.f32.xlu0 %v446
    %v448 = vpop.xlane.xlu0 %447
    %v449 = vrcp.pop 256.0
    %v450 = vmul.f32 %v445, %v449
    %v451 = vmul.f32 %v448, %v449
    %v452 = vmul.f32 %v433, %v433
    %v453 = vmul.f32 %v435, %v435
    %v454 = vmul.f32 %v439, %v439
    %v455 = vmul.f32 %v441, %v441
    %v456 = vadd.f32 %v452, %v453
    %457 = vadd.xlane.f32.xlu0 %v456
    %v458 = vpop.xlane.xlu0 %457
    %v459 = vadd.f32 %v454, %v455
    %460 = vadd.xlane.f32.xlu0 %v459
    %v461 = vpop.xlane.xlu0 %460
    %v462 = vmul.f32 %v458, %v449
    %v463 = vmul.f32 %v461, %v449
    %v464 = vmul.f32 %v450, %v450
    %v465 = vmul.f32 %v451, %v451
    %v466 = vsub.f32 %v462, %v464
    %v467 = vsub.f32 %v463, %v465
    %v468 = vld [vmem:[%s4] sm:$0xff]
    %v469 = vld [vmem:[%s4 + $0x8] sm:$0xff]
    %v470 = vadd.f32 %v466, 1e-05
    %v471 = vadd.f32 %v467, 1e-05
    %v472 = vrsqrt.pop %v470
    %v473 = vrsqrt.pop %v471
    %v474 = vmul.f32 %v468, %v472
    %v475 = vmul.f32 %v469, %v473
    %v476 = vld [vmem:[%s5] sm:$0xff]
    %v477 = vld [vmem:[%s5 + $0x8] sm:$0xff]
    %v478 = vmul.f32 %v450, %v474
    %v479 = vmul.f32 %v451, %v475
    %v480 = vsub.f32 %v476, %v478
    %v481 = vsub.f32 %v477, %v479
    %483 = vset.pattern.permute.xlu0 0
    %484 = vperm.xlu0 %483, %v474
    %v485 = vpop.permute.xlu0 %484
    %488 = vset.pattern.permute.xlu0 0
    %489 = vperm.xlu0 %488, %v475
    %v490 = vpop.permute.xlu0 %489
    %v492 = vmul.f32 %v433, %v485
    %v493 = vmul.f32 %v435, %v485
    %v494 = vmul.f32 %v439, %v490
    %v495 = vmul.f32 %v441, %v490
    %497 = vset.pattern.permute.xlu0 0
    %498 = vperm.xlu0 %497, %v480
    %v499 = vpop.permute.xlu0 %498
    %502 = vset.pattern.permute.xlu0 0
    %503 = vperm.xlu0 %502, %v481
    %v504 = vpop.permute.xlu0 %503
    %v506 = vadd.f32 %v492, %v499
    %v507 = vadd.f32 %v493, %v499
    %v508 = vadd.f32 %v494, %v504
    %v509 = vadd.f32 %v495, %v504
    %v510 = vmax.f32 %v506, 0.0
    %v511 = vmax.f32 %v507, 0.0
    %v512 = vmax.f32 %v508, 0.0
    %v513 = vmax.f32 %v509, 0.0
    %514 = vrot.lane.b32.xlu0 %v510, 1
    %v515 = vpop.permute.xlu0 %514
    %516 = vrot.lane.b32.xlu0 %v512, 1
    %v517 = vpop.permute.xlu0 %516
    %518 = vrot.lane.b32.xlu0 %v511, 1
    %v519 = vpop.permute.xlu0 %518
    %520 = vrot.lane.b32.xlu0 %v513, 1
    %v521 = vpop.permute.xlu0 %520
    %v522 = vsel %vm140, %v515, %v519
    %v523 = vsel %vm140, %v517, %v521
    %v524 = vsel %vm140, %v519, %v515
    %v525 = vsel %vm140, %v521, %v517
    %v526 = vsel %vm100, %v524, 0.0
    %v527 = vsel %vm101, %v522, 0.0
    %v528 = vsel %vm100, %v525, 0.0
    %v529 = vsel %vm101, %v523, 0.0
    %530 = vrot.lane.b32.xlu0 %v510, 127
    %v531 = vpop.permute.xlu0 %530
    %532 = vrot.lane.b32.xlu0 %v512, 127
    %v533 = vpop.permute.xlu0 %532
    %534 = vrot.lane.b32.xlu0 %v511, 127
    %v535 = vpop.permute.xlu0 %534
    %536 = vrot.lane.b32.xlu0 %v513, 127
    %v537 = vpop.permute.xlu0 %536
    %v538 = vsel %vm149, %v531, %v535
    %v539 = vsel %vm149, %v533, %v537
    %v540 = vsel %vm149, %v535, %v531
    %v541 = vsel %vm149, %v537, %v533
    %v542 = vsel %vm104, %v538, 0.0
    %v543 = vsel %vm105, %v540, 0.0
    %v544 = vsel %vm104, %v539, 0.0
    %v545 = vsel %vm105, %v541, 0.0
    %v546 = vld [vmem:[%s6] sm:$0xff]
    %v547 = vld [vmem:[%s6 + $0x8] sm:$0xff]
    %v549 = vsel %vm359, %v546, 0
    %v552 = vsel %vm359, %v547, 0
    %554 = vmatprep.subr.mxu0 0.0
    %555 = vmatpush1.msra.mxu0 0.0
    %556 = vmatprep.subr.mxu0 0.0
    %557 = vmatpush1.msra.mxu0 0.0
    %558 = vmatprep.subr.mxu0 0.0
    %559 = vmatpush1.msra.mxu0 0.0
    %560 = vmatprep.subr.mxu0 0.0
    %561 = vmatpush1.msra.mxu0 0.0
    %562 = vmatprep.subr.mxu0 0.0
    %563 = vmatpush1.msra.mxu0 0.0
    %564 = vmatprep.subr.mxu0 0.0
    %565 = vmatpush1.msra.mxu0 0.0
    %566 = vmatprep.subr.mxu0 0.0
    %567 = vmatpush1.msra.mxu0 0.0
    %568 = vmatprep.subr.mxu0 0.0
    %569 = vmatpush1.msra.mxu0 0.0
    %570 = vmatprep.subr.mxu0 0.0
    %571 = vmatpush1.msra.mxu0 0.0
    %572 = vmatprep.subr.mxu0 0.0
    %573 = vmatpush1.msra.mxu0 0.0
    %574 = vmatprep.subr.mxu0 %v545
    %575 = vmatpush1.msra.mxu0 %v544
    %576 = vmatprep.subr.mxu0 %v543
    %577 = vmatpush1.msra.mxu0 %v542
    %578 = vmatprep.subr.mxu0 %v513
    %579 = vmatpush1.msra.mxu0 %v512
    %580 = vmatprep.subr.mxu0 %v511
    %581 = vmatpush1.msra.mxu0 %v510
    %582 = vmatprep.subr.mxu0 %v529
    %583 = vmatpush1.msra.mxu0 %v528
    %584 = vmatprep.subr.mxu0 %v527
    %585 = vmatpush1.msra.mxu0 %v526
    %586 = vmatprep.subr.mxu0 0.0
    %587 = vmatpush2.msra.mxu0 0.0
    %588 = vmatprep.subr.mxu0 0.0
    %589 = vmatpush2.msra.mxu0 0.0
    %590 = vmatprep.subr.mxu0 0.0
    %591 = vmatpush2.msra.mxu0 0.0
    %592 = vmatprep.subr.mxu0 0.0
    %593 = vmatpush2.msra.mxu0 0.0
    %594 = vmatprep.subr.mxu0 0.0
    %595 = vmatpush2.msra.mxu0 0.0
    %596 = vmatprep.subr.mxu0 0.0
    %597 = vmatpush2.msra.mxu0 0.0
    %598 = vmatprep.subr.mxu0 0.0
    %599 = vmatpush2.msra.mxu0 0.0
    %600 = vmatprep.subr.mxu0 0.0
    %601 = vmatpush2.msra.mxu0 0.0
    %602 = vmatprep.subr.mxu0 0.0
    %603 = vmatpush2.msra.mxu0 0.0
    %604 = vmatprep.subr.mxu0 0.0
    %605 = vmatpush2.msra.mxu0 0.0
    %606 = vmatprep.subr.mxu0 0.0
    %607 = vmatpush2.msra.mxu0 0.0
    %608 = vmatprep.subr.mxu0 0.0
    %609 = vmatpush2.msra.mxu0 0.0
    %610 = vmatprep.subr.mxu0 0.0
    %611 = vmatpush2.msra.mxu0 0.0
    %612 = vmatprep.subr.mxu0 0.0
    %613 = vmatpush2.msra.mxu0 0.0
    %614 = vmatprep.subr.mxu0 0.0
    %615 = vmatpush2.msra.mxu0 0.0
    %616 = vmatprep.subr.mxu0 0.0
    %617 = vmatpush2.msra.mxu0 0.0
    %618 = vmatprep.mubr.f32.mxu0 0.0
    %619 = vmatmul.mubr.f32.gmra.mxu0 %v549
    %v620 = vpop.f32.mrf.mxu0
    %v621 = vadd.f32 0.0, %v620
    %v622 = vpop.f32.mrf.mxu0
    %v623 = vadd.f32 0.0, %v622
    %624 = vmatprep.mubr.f32.mxu0 0.0
    %625 = vmatmul.mubr.f32.gmra.mxu0 %v552
    %v626 = vpop.f32.mrf.mxu0
    %v627 = vadd.f32 0.0, %v626
    %v628 = vpop.f32.mrf.mxu0
    %v629 = vadd.f32 0.0, %v628
    %630 = vdwg.mxu0
    %v631 = vadd.f32 %v621, %v623
    %632 = vadd.xlane.f32.xlu0 %v631
    %v633 = vpop.xlane.xlu0 %632
    %v634 = vadd.f32 %v627, %v629
    %635 = vadd.xlane.f32.xlu0 %v634
    %v636 = vpop.xlane.xlu0 %635
    %v637 = vmul.f32 %v633, %v449
    %v638 = vmul.f32 %v636, %v449
    %v639 = vmul.f32 %v621, %v621
    %v640 = vmul.f32 %v623, %v623
    %v641 = vmul.f32 %v627, %v627
    %v642 = vmul.f32 %v629, %v629
    %v643 = vadd.f32 %v639, %v640
    %644 = vadd.xlane.f32.xlu0 %v643
    %v645 = vpop.xlane.xlu0 %644
    %v646 = vadd.f32 %v641, %v642
    %647 = vadd.xlane.f32.xlu0 %v646
    %v648 = vpop.xlane.xlu0 %647
    %v649 = vmul.f32 %v645, %v449
    %v650 = vmul.f32 %v648, %v449
    %v651 = vmul.f32 %v637, %v637
    %v652 = vmul.f32 %v638, %v638
    %v653 = vsub.f32 %v649, %v651
    %v654 = vsub.f32 %v650, %v652
    %v655 = vld [vmem:[%s7] sm:$0xff]
    %v656 = vld [vmem:[%s7 + $0x8] sm:$0xff]
    %v657 = vadd.f32 %v653, 1e-05
    %v658 = vadd.f32 %v654, 1e-05
    %v659 = vrsqrt.pop %v657
    %v660 = vrsqrt.pop %v658
    %v661 = vmul.f32 %v655, %v659
    %v662 = vmul.f32 %v656, %v660
    %v663 = vld [vmem:[%s8] sm:$0xff]
    %v664 = vld [vmem:[%s8 + $0x8] sm:$0xff]
    %v665 = vmul.f32 %v637, %v661
    %v666 = vmul.f32 %v638, %v662
    %v667 = vsub.f32 %v663, %v665
    %v668 = vsub.f32 %v664, %v666
    %670 = vset.pattern.permute.xlu0 0
    %671 = vperm.xlu0 %670, %v661
    %v672 = vpop.permute.xlu0 %671
    %675 = vset.pattern.permute.xlu0 0
    %676 = vperm.xlu0 %675, %v662
    %v677 = vpop.permute.xlu0 %676
    %v679 = vmul.f32 %v621, %v672
    %v680 = vmul.f32 %v623, %v672
    %v681 = vmul.f32 %v627, %v677
    %v682 = vmul.f32 %v629, %v677
    %684 = vset.pattern.permute.xlu0 0
    %685 = vperm.xlu0 %684, %v667
    %v686 = vpop.permute.xlu0 %685
    %689 = vset.pattern.permute.xlu0 0
    %690 = vperm.xlu0 %689, %v668
    %v691 = vpop.permute.xlu0 %690
    %v693 = vadd.f32 %v679, %v686
    %v694 = vadd.f32 %v680, %v686
    %v695 = vadd.f32 %v681, %v691
    %v696 = vadd.f32 %v682, %v691
    %v697 = vadd.f32 %v321, %v693
    %v698 = vadd.f32 %v322, %v694
    %v699 = vadd.f32 %v323, %v695
    %v700 = vadd.f32 %v324, %v696
    %701 = vrot.lane.b32.xlu0 %v697, 1
    %v702 = vpop.permute.xlu0 %701
    %703 = vrot.lane.b32.xlu0 %v699, 1
    %v704 = vpop.permute.xlu0 %703
    %705 = vrot.lane.b32.xlu0 %v698, 1
    %v706 = vpop.permute.xlu0 %705
    %707 = vrot.lane.b32.xlu0 %v700, 1
    %v708 = vpop.permute.xlu0 %707
    %v709 = vsel %vm140, %v702, %v706
    %v710 = vsel %vm140, %v704, %v708
    %v711 = vsel %vm140, %v706, %v702
    %v712 = vsel %vm140, %v708, %v704
    %v713 = vsel %vm100, %v711, 0.0
    %v714 = vsel %vm101, %v709, 0.0
    %v715 = vsel %vm100, %v712, 0.0
    %v716 = vsel %vm101, %v710, 0.0
    %717 = vrot.lane.b32.xlu0 %v697, 127
    %v718 = vpop.permute.xlu0 %717
    %719 = vrot.lane.b32.xlu0 %v699, 127
    %v720 = vpop.permute.xlu0 %719
    %721 = vrot.lane.b32.xlu0 %v698, 127
    %v722 = vpop.permute.xlu0 %721
    %723 = vrot.lane.b32.xlu0 %v700, 127
    %v724 = vpop.permute.xlu0 %723
    %v725 = vsel %vm149, %v718, %v722
    %v726 = vsel %vm149, %v720, %v724
    %v727 = vsel %vm149, %v722, %v718
    %v728 = vsel %vm149, %v724, %v720
    %v729 = vsel %vm104, %v725, 0.0
    %v730 = vsel %vm105, %v727, 0.0
    %v731 = vsel %vm104, %v726, 0.0
    %v732 = vsel %vm105, %v728, 0.0
    %v733 = vld [vmem:[%s9] sm:$0xff]
    %v734 = vld [vmem:[%s9 + $0x8] sm:$0xff]
    %v736 = vsel %vm359, %v733, 0
    %v739 = vsel %vm359, %v734, 0
    %741 = vmatprep.subr.mxu0 0.0
    %742 = vmatpush1.msra.mxu0 0.0
    %743 = vmatprep.subr.mxu0 0.0
    %744 = vmatpush1.msra.mxu0 0.0
    %745 = vmatprep.subr.mxu0 0.0
    %746 = vmatpush1.msra.mxu0 0.0
    %747 = vmatprep.subr.mxu0 0.0
    %748 = vmatpush1.msra.mxu0 0.0
    %749 = vmatprep.subr.mxu0 0.0
    %750 = vmatpush1.msra.mxu0 0.0
    %751 = vmatprep.subr.mxu0 0.0
    %752 = vmatpush1.msra.mxu0 0.0
    %753 = vmatprep.subr.mxu0 0.0
    %754 = vmatpush1.msra.mxu0 0.0
    %755 = vmatprep.subr.mxu0 0.0
    %756 = vmatpush1.msra.mxu0 0.0
    %757 = vmatprep.subr.mxu0 0.0
    %758 = vmatpush1.msra.mxu0 0.0
    %759 = vmatprep.subr.mxu0 0.0
    %760 = vmatpush1.msra.mxu0 0.0
    %761 = vmatprep.subr.mxu0 %v732
    %762 = vmatpush1.msra.mxu0 %v731
    %763 = vmatprep.subr.mxu0 %v730
    %764 = vmatpush1.msra.mxu0 %v729
    %765 = vmatprep.subr.mxu0 %v700
    %766 = vmatpush1.msra.mxu0 %v699
    %767 = vmatprep.subr.mxu0 %v698
    %768 = vmatpush1.msra.mxu0 %v697
    %769 = vmatprep.subr.mxu0 %v716
    %770 = vmatpush1.msra.mxu0 %v715
    %771 = vmatprep.subr.mxu0 %v714
    %772 = vmatpush1.msra.mxu0 %v713
    %773 = vmatprep.subr.mxu0 0.0
    %774 = vmatpush2.msra.mxu0 0.0
    %775 = vmatprep.subr.mxu0 0.0
    %776 = vmatpush2.msra.mxu0 0.0
    %777 = vmatprep.subr.mxu0 0.0
    %778 = vmatpush2.msra.mxu0 0.0
    %779 = vmatprep.subr.mxu0 0.0
    %780 = vmatpush2.msra.mxu0 0.0
    %781 = vmatprep.subr.mxu0 0.0
    %782 = vmatpush2.msra.mxu0 0.0
    %783 = vmatprep.subr.mxu0 0.0
    %784 = vmatpush2.msra.mxu0 0.0
    %785 = vmatprep.subr.mxu0 0.0
    %786 = vmatpush2.msra.mxu0 0.0
    %787 = vmatprep.subr.mxu0 0.0
    %788 = vmatpush2.msra.mxu0 0.0
    %789 = vmatprep.subr.mxu0 0.0
    %790 = vmatpush2.msra.mxu0 0.0
    %791 = vmatprep.subr.mxu0 0.0
    %792 = vmatpush2.msra.mxu0 0.0
    %793 = vmatprep.subr.mxu0 0.0
    %794 = vmatpush2.msra.mxu0 0.0
    %795 = vmatprep.subr.mxu0 0.0
    %796 = vmatpush2.msra.mxu0 0.0
    %797 = vmatprep.subr.mxu0 0.0
    %798 = vmatpush2.msra.mxu0 0.0
    %799 = vmatprep.subr.mxu0 0.0
    %800 = vmatpush2.msra.mxu0 0.0
    %801 = vmatprep.subr.mxu0 0.0
    %802 = vmatpush2.msra.mxu0 0.0
    %803 = vmatprep.subr.mxu0 0.0
    %804 = vmatpush2.msra.mxu0 0.0
    %805 = vmatprep.mubr.f32.mxu0 0.0
    %806 = vmatmul.mubr.f32.gmra.mxu0 %v736
    %v807 = vpop.f32.mrf.mxu0
    %v808 = vadd.f32 0.0, %v807
    %v809 = vpop.f32.mrf.mxu0
    %v810 = vadd.f32 0.0, %v809
    %811 = vmatprep.mubr.f32.mxu0 0.0
    %812 = vmatmul.mubr.f32.gmra.mxu0 %v739
    %v813 = vpop.f32.mrf.mxu0
    %v814 = vadd.f32 0.0, %v813
    %v815 = vpop.f32.mrf.mxu0
    %v816 = vadd.f32 0.0, %v815
    %817 = vdwg.mxu0
    %v818 = vadd.f32 %v808, %v810
    %819 = vadd.xlane.f32.xlu0 %v818
    %v820 = vpop.xlane.xlu0 %819
    %v821 = vadd.f32 %v814, %v816
    %822 = vadd.xlane.f32.xlu0 %v821
    %v823 = vpop.xlane.xlu0 %822
    %v824 = vmul.f32 %v820, %v449
    %v825 = vmul.f32 %v823, %v449
    %v826 = vmul.f32 %v808, %v808
    %v827 = vmul.f32 %v810, %v810
    %v828 = vmul.f32 %v814, %v814
    %v829 = vmul.f32 %v816, %v816
    %v830 = vadd.f32 %v826, %v827
    %831 = vadd.xlane.f32.xlu0 %v830
    %v832 = vpop.xlane.xlu0 %831
    %v833 = vadd.f32 %v828, %v829
    %834 = vadd.xlane.f32.xlu0 %v833
    %v835 = vpop.xlane.xlu0 %834
    %v836 = vmul.f32 %v832, %v449
    %v837 = vmul.f32 %v835, %v449
    %v838 = vmul.f32 %v824, %v824
    %v839 = vmul.f32 %v825, %v825
    %v840 = vsub.f32 %v836, %v838
    %v841 = vsub.f32 %v837, %v839
    %v842 = vld [vmem:[%s10] sm:$0xff]
    %v843 = vld [vmem:[%s10 + $0x8] sm:$0xff]
    %v844 = vadd.f32 %v840, 1e-05
    %v845 = vadd.f32 %v841, 1e-05
    %v846 = vrsqrt.pop %v844
    %v847 = vrsqrt.pop %v845
    %v848 = vmul.f32 %v842, %v846
    %v849 = vmul.f32 %v843, %v847
    %v850 = vld [vmem:[%s11] sm:$0xff]
    %v851 = vld [vmem:[%s11 + $0x8] sm:$0xff]
    %v852 = vmul.f32 %v824, %v848
    %v853 = vmul.f32 %v825, %v849
    %v854 = vsub.f32 %v850, %v852
    %v855 = vsub.f32 %v851, %v853
    %857 = vset.pattern.permute.xlu0 0
    %858 = vperm.xlu0 %857, %v848
    %v859 = vpop.permute.xlu0 %858
    %862 = vset.pattern.permute.xlu0 0
    %863 = vperm.xlu0 %862, %v849
    %v864 = vpop.permute.xlu0 %863
    %v866 = vmul.f32 %v808, %v859
    %v867 = vmul.f32 %v810, %v859
    %v868 = vmul.f32 %v814, %v864
    %v869 = vmul.f32 %v816, %v864
    %871 = vset.pattern.permute.xlu0 0
    %872 = vperm.xlu0 %871, %v854
    %v873 = vpop.permute.xlu0 %872
    %876 = vset.pattern.permute.xlu0 0
    %877 = vperm.xlu0 %876, %v855
    %v878 = vpop.permute.xlu0 %877
    %v880 = vadd.f32 %v866, %v873
    %v881 = vadd.f32 %v867, %v873
    %v882 = vadd.f32 %v868, %v878
    %v883 = vadd.f32 %v869, %v878
    %v884 = vmax.f32 %v880, 0.0
    %v885 = vmax.f32 %v881, 0.0
    %v886 = vmax.f32 %v882, 0.0
    %v887 = vmax.f32 %v883, 0.0
    %888 = vrot.lane.b32.xlu0 %v884, 1
    %v889 = vpop.permute.xlu0 %888
    %890 = vrot.lane.b32.xlu0 %v886, 1
    %v891 = vpop.permute.xlu0 %890
    %892 = vrot.lane.b32.xlu0 %v885, 1
    %v893 = vpop.permute.xlu0 %892
    %894 = vrot.lane.b32.xlu0 %v887, 1
    %v895 = vpop.permute.xlu0 %894
    %v896 = vsel %vm140, %v889, %v893
    %v897 = vsel %vm140, %v891, %v895
    %v898 = vsel %vm140, %v893, %v889
    %v899 = vsel %vm140, %v895, %v891
    %v900 = vsel %vm100, %v898, 0.0
    %v901 = vsel %vm101, %v896, 0.0
    %v902 = vsel %vm100, %v899, 0.0
    %v903 = vsel %vm101, %v897, 0.0
    %904 = vrot.lane.b32.xlu0 %v884, 127
    %v905 = vpop.permute.xlu0 %904
    %906 = vrot.lane.b32.xlu0 %v886, 127
    %v907 = vpop.permute.xlu0 %906
    %908 = vrot.lane.b32.xlu0 %v885, 127
    %v909 = vpop.permute.xlu0 %908
    %910 = vrot.lane.b32.xlu0 %v887, 127
    %v911 = vpop.permute.xlu0 %910
    %v912 = vsel %vm149, %v905, %v909
    %v913 = vsel %vm149, %v907, %v911
    %v914 = vsel %vm149, %v909, %v905
    %v915 = vsel %vm149, %v911, %v907
    %v916 = vsel %vm104, %v912, 0.0
    %v917 = vsel %vm105, %v914, 0.0
    %v918 = vsel %vm104, %v913, 0.0
    %v919 = vsel %vm105, %v915, 0.0
    %v920 = vld [vmem:[%s12] sm:$0xff]
    %v921 = vld [vmem:[%s12 + $0x8] sm:$0xff]
    %v923 = vsel %vm359, %v920, 0
    %v926 = vsel %vm359, %v921, 0
    %928 = vmatprep.subr.mxu0 0.0
    %929 = vmatpush1.msra.mxu0 0.0
    %930 = vmatprep.subr.mxu0 0.0
    %931 = vmatpush1.msra.mxu0 0.0
    %932 = vmatprep.subr.mxu0 0.0
    %933 = vmatpush1.msra.mxu0 0.0
    %934 = vmatprep.subr.mxu0 0.0
    %935 = vmatpush1.msra.mxu0 0.0
    %936 = vmatprep.subr.mxu0 0.0
    %937 = vmatpush1.msra.mxu0 0.0
    %938 = vmatprep.subr.mxu0 0.0
    %939 = vmatpush1.msra.mxu0 0.0
    %940 = vmatprep.subr.mxu0 0.0
    %941 = vmatpush1.msra.mxu0 0.0
    %942 = vmatprep.subr.mxu0 0.0
    %943 = vmatpush1.msra.mxu0 0.0
    %944 = vmatprep.subr.mxu0 0.0
    %945 = vmatpush1.msra.mxu0 0.0
    %946 = vmatprep.subr.mxu0 0.0
    %947 = vmatpush1.msra.mxu0 0.0
    %948 = vmatprep.subr.mxu0 %v919
    %949 = vmatpush1.msra.mxu0 %v918
    %950 = vmatprep.subr.mxu0 %v917
    %951 = vmatpush1.msra.mxu0 %v916
    %952 = vmatprep.subr.mxu0 %v887
    %953 = vmatpush1.msra.mxu0 %v886
    %954 = vmatprep.subr.mxu0 %v885
    %955 = vmatpush1.msra.mxu0 %v884
    %956 = vmatprep.subr.mxu0 %v903
    %957 = vmatpush1.msra.mxu0 %v902
    %958 = vmatprep.subr.mxu0 %v901
    %959 = vmatpush1.msra.mxu0 %v900
    %960 = vmatprep.subr.mxu0 0.0
    %961 = vmatpush2.msra.mxu0 0.0
    %962 = vmatprep.subr.mxu0 0.0
    %963 = vmatpush2.msra.mxu0 0.0
    %964 = vmatprep.subr.mxu0 0.0
    %965 = vmatpush2.msra.mxu0 0.0
    %966 = vmatprep.subr.mxu0 0.0
    %967 = vmatpush2.msra.mxu0 0.0
    %968 = vmatprep.subr.mxu0 0.0
    %969 = vmatpush2.msra.mxu0 0.0
    %970 = vmatprep.subr.mxu0 0.0
    %971 = vmatpush2.msra.mxu0 0.0
    %972 = vmatprep.subr.mxu0 0.0
    %973 = vmatpush2.msra.mxu0 0.0
    %974 = vmatprep.subr.mxu0 0.0
    %975 = vmatpush2.msra.mxu0 0.0
    %976 = vmatprep.subr.mxu0 0.0
    %977 = vmatpush2.msra.mxu0 0.0
    %978 = vmatprep.subr.mxu0 0.0
    %979 = vmatpush2.msra.mxu0 0.0
    %980 = vmatprep.subr.mxu0 0.0
    %981 = vmatpush2.msra.mxu0 0.0
    %982 = vmatprep.subr.mxu0 0.0
    %983 = vmatpush2.msra.mxu0 0.0
    %984 = vmatprep.subr.mxu0 0.0
    %985 = vmatpush2.msra.mxu0 0.0
    %986 = vmatprep.subr.mxu0 0.0
    %987 = vmatpush2.msra.mxu0 0.0
    %988 = vmatprep.subr.mxu0 0.0
    %989 = vmatpush2.msra.mxu0 0.0
    %990 = vmatprep.subr.mxu0 0.0
    %991 = vmatpush2.msra.mxu0 0.0
    %992 = vmatprep.mubr.f32.mxu0 0.0
    %993 = vmatmul.mubr.f32.gmra.mxu0 %v923
    %v994 = vpop.f32.mrf.mxu0
    %v995 = vadd.f32 0.0, %v994
    %v996 = vpop.f32.mrf.mxu0
    %v997 = vadd.f32 0.0, %v996
    %998 = vmatprep.mubr.f32.mxu0 0.0
    %999 = vmatmul.mubr.f32.gmra.mxu0 %v926
    %v1000 = vpop.f32.mrf.mxu0
    %v1001 = vadd.f32 0.0, %v1000
    %v1002 = vpop.f32.mrf.mxu0
    %v1003 = vadd.f32 0.0, %v1002
    %1004 = vdwg.mxu0
    %v1005 = vadd.f32 %v995, %v997
    %1006 = vadd.xlane.f32.xlu0 %v1005
    %v1007 = vpop.xlane.xlu0 %1006
    %v1008 = vadd.f32 %v1001, %v1003
    %1009 = vadd.xlane.f32.xlu0 %v1008
    %v1010 = vpop.xlane.xlu0 %1009
    %v1011 = vmul.f32 %v1007, %v449
    %v1012 = vmul.f32 %v1010, %v449
    %v1013 = vmul.f32 %v995, %v995
    %v1014 = vmul.f32 %v997, %v997
    %v1015 = vmul.f32 %v1001, %v1001
    %v1016 = vmul.f32 %v1003, %v1003
    %v1017 = vadd.f32 %v1013, %v1014
    %1018 = vadd.xlane.f32.xlu0 %v1017
    %v1019 = vpop.xlane.xlu0 %1018
    %v1020 = vadd.f32 %v1015, %v1016
    %1021 = vadd.xlane.f32.xlu0 %v1020
    %v1022 = vpop.xlane.xlu0 %1021
    %v1023 = vmul.f32 %v1019, %v449
    %v1024 = vmul.f32 %v1022, %v449
    %v1025 = vmul.f32 %v1011, %v1011
    %v1026 = vmul.f32 %v1012, %v1012
    %v1027 = vsub.f32 %v1023, %v1025
    %v1028 = vsub.f32 %v1024, %v1026
    %v1029 = vld [vmem:[%s13] sm:$0xff]
    %v1030 = vld [vmem:[%s13 + $0x8] sm:$0xff]
    %v1031 = vadd.f32 %v1027, 1e-05
    %v1032 = vadd.f32 %v1028, 1e-05
    %v1033 = vrsqrt.pop %v1031
    %v1034 = vrsqrt.pop %v1032
    %v1035 = vmul.f32 %v1029, %v1033
    %v1036 = vmul.f32 %v1030, %v1034
    %v1037 = vld [vmem:[%s14] sm:$0xff]
    %v1038 = vld [vmem:[%s14 + $0x8] sm:$0xff]
    %v1039 = vmul.f32 %v1011, %v1035
    %v1040 = vmul.f32 %v1012, %v1036
    %v1041 = vsub.f32 %v1037, %v1039
    %v1042 = vsub.f32 %v1038, %v1040
    %1044 = vset.pattern.permute.xlu0 0
    %1045 = vperm.xlu0 %1044, %v1035
    %v1046 = vpop.permute.xlu0 %1045
    %1049 = vset.pattern.permute.xlu0 0
    %1050 = vperm.xlu0 %1049, %v1036
    %v1051 = vpop.permute.xlu0 %1050
    %v1053 = vmul.f32 %v995, %v1046
    %v1054 = vmul.f32 %v997, %v1046
    %v1055 = vmul.f32 %v1001, %v1051
    %v1056 = vmul.f32 %v1003, %v1051
    %1058 = vset.pattern.permute.xlu0 0
    %1059 = vperm.xlu0 %1058, %v1041
    %v1060 = vpop.permute.xlu0 %1059
    %1063 = vset.pattern.permute.xlu0 0
    %1064 = vperm.xlu0 %1063, %v1042
    %v1065 = vpop.permute.xlu0 %1064
    %v1067 = vadd.f32 %v1053, %v1060
    %v1068 = vadd.f32 %v1054, %v1060
    %v1069 = vadd.f32 %v1055, %v1065
    %v1070 = vadd.f32 %v1056, %v1065
    %v1071 = vadd.f32 %v697, %v1067
    %v1072 = vadd.f32 %v698, %v1068
    %v1073 = vadd.f32 %v699, %v1069
    %v1074 = vadd.f32 %v700, %v1070
    %v1075 = vld [vmem:[%s15] sm:$0xff]
    %vm1076 = vcmask 130048
    %v1078 = vsel %vm1076, %v1075, 0
    %1080 = vmatprep.subr.mxu0 0.0
    %1081 = vmatpush1.msra.mxu0 0.0
    %1082 = vmatprep.subr.mxu0 0.0
    %1083 = vmatpush1.msra.mxu0 0.0
    %1084 = vmatprep.subr.mxu0 0.0
    %1085 = vmatpush1.msra.mxu0 0.0
    %1086 = vmatprep.subr.mxu0 0.0
    %1087 = vmatpush1.msra.mxu0 0.0
    %1088 = vmatprep.subr.mxu0 0.0
    %1089 = vmatpush1.msra.mxu0 0.0
    %1090 = vmatprep.subr.mxu0 0.0
    %1091 = vmatpush1.msra.mxu0 0.0
    %1092 = vmatprep.subr.mxu0 0.0
    %1093 = vmatpush1.msra.mxu0 0.0
    %1094 = vmatprep.subr.mxu0 0.0
    %1095 = vmatpush1.msra.mxu0 0.0
    %1096 = vmatprep.subr.mxu0 0.0
    %1097 = vmatpush1.msra.mxu0 0.0
    %1098 = vmatprep.subr.mxu0 0.0
    %1099 = vmatpush1.msra.mxu0 0.0
    %1100 = vmatprep.subr.mxu0 0.0
    %1101 = vmatpush1.msra.mxu0 0.0
    %1102 = vmatprep.subr.mxu0 0.0
    %1103 = vmatpush1.msra.mxu0 0.0
    %1104 = vmatprep.subr.mxu0 0.0
    %1105 = vmatpush1.msra.mxu0 0.0
    %1106 = vmatprep.subr.mxu0 0.0
    %1107 = vmatpush1.msra.mxu0 0.0
    %1108 = vmatprep.subr.mxu0 %v1074
    %1109 = vmatpush1.msra.mxu0 %v1073
    %1110 = vmatprep.subr.mxu0 %v1072
    %1111 = vmatpush1.msra.mxu0 %v1071
    %1112 = vmatprep.subr.mxu0 0.0
    %1113 = vmatpush2.msra.mxu0 0.0
    %1114 = vmatprep.subr.mxu0 0.0
    %1115 = vmatpush2.msra.mxu0 0.0
    %1116 = vmatprep.subr.mxu0 0.0
    %1117 = vmatpush2.msra.mxu0 0.0
    %1118 = vmatprep.subr.mxu0 0.0
    %1119 = vmatpush2.msra.mxu0 0.0
    %1120 = vmatprep.subr.mxu0 0.0
    %1121 = vmatpush2.msra.mxu0 0.0
    %1122 = vmatprep.subr.mxu0 0.0
    %1123 = vmatpush2.msra.mxu0 0.0
    %1124 = vmatprep.subr.mxu0 0.0
    %1125 = vmatpush2.msra.mxu0 0.0
    %1126 = vmatprep.subr.mxu0 0.0
    %1127 = vmatpush2.msra.mxu0 0.0
    %1128 = vmatprep.subr.mxu0 0.0
    %1129 = vmatpush2.msra.mxu0 0.0
    %1130 = vmatprep.subr.mxu0 0.0
    %1131 = vmatpush2.msra.mxu0 0.0
    %1132 = vmatprep.subr.mxu0 0.0
    %1133 = vmatpush2.msra.mxu0 0.0
    %1134 = vmatprep.subr.mxu0 0.0
    %1135 = vmatpush2.msra.mxu0 0.0
    %1136 = vmatprep.subr.mxu0 0.0
    %1137 = vmatpush2.msra.mxu0 0.0
    %1138 = vmatprep.subr.mxu0 0.0
    %1139 = vmatpush2.msra.mxu0 0.0
    %1140 = vmatprep.subr.mxu0 0.0
    %1141 = vmatpush2.msra.mxu0 0.0
    %1142 = vmatprep.subr.mxu0 0.0
    %1143 = vmatpush2.msra.mxu0 0.0
    %1144 = vmatprep.mubr.f32.mxu0 0.0
    %1145 = vmatmul.mubr.f32.gmra.mxu0 %v1078
    %v1146 = vpop.f32.mrf.mxu0
    %v1147 = vadd.f32 0.0, %v1146
    %v1148 = vpop.f32.mrf.mxu0
    %v1149 = vadd.f32 0.0, %v1148
    %1150 = vdwg.mxu0
    %1151 = vrot.lane.b32.xlu0 %v1147, 3
    %v1152 = vpop.permute.xlu0 %1151
    %1153 = vrot.lane.b32.xlu0 %v1149, 3
    %v1154 = vpop.permute.xlu0 %1153
    %v1155 = vsel %vm122, %v1152, %v1154
    %v1156 = vsel %vm122, %v1154, %v1152
    %v1157 = vsel %vm86, %v1156, 0.0
    %v1158 = vsel %vm87, %v1155, 0.0
    %v1161 = vrot.slane %v1147, 1
    %v1162 = vrot.slane %v1149, 1
    %1165 = vrot.lane.b32.xlu0 %v1161, 2
    %v1166 = vpop.permute.xlu0 %1165
    %1167 = vrot.lane.b32.xlu0 %v1162, 2
    %v1168 = vpop.permute.xlu0 %1167
    %v1169 = vsel %vm131, %v1166, %v1168
    %v1170 = vsel %vm131, %v1168, %v1166
    %v1171 = vsel %vm88, %v1170, 0.0
    %v1172 = vsel %vm89, %v1169, 0.0
    %v1173 = vadd.f32 %v1157, %v1171
    %v1174 = vadd.f32 %v1158, %v1172
    %v1175 = vrot.slane %v1147, 2
    %v1176 = vrot.slane %v1149, 2
    %1179 = vrot.lane.b32.xlu0 %v1175, 1
    %v1180 = vpop.permute.xlu0 %1179
    %1181 = vrot.lane.b32.xlu0 %v1176, 1
    %v1182 = vpop.permute.xlu0 %1181
    %v1183 = vsel %vm140, %v1180, %v1182
    %v1184 = vsel %vm140, %v1182, %v1180
    %v1185 = vsel %vm90, %v1184, 0.0
    %v1186 = vsel %vm91, %v1183, 0.0
    %v1187 = vadd.f32 %v1173, %v1185
    %v1188 = vadd.f32 %v1174, %v1186
    %v1189 = vrot.slane %v1147, 3
    %v1190 = vrot.slane %v1149, 3
    %v1193 = vadd.f32 %v1187, %v1189
    %v1194 = vadd.f32 %v1188, %v1190
    %v1195 = vrot.slane %v1147, 4
    %v1196 = vrot.slane %v1149, 4
    %1199 = vrot.lane.b32.xlu0 %v1195, 127
    %v1200 = vpop.permute.xlu0 %1199
    %1201 = vrot.lane.b32.xlu0 %v1196, 127
    %v1202 = vpop.permute.xlu0 %1201
    %v1203 = vsel %vm149, %v1200, %v1202
    %v1204 = vsel %vm149, %v1202, %v1200
    %v1205 = vsel %vm92, %v1203, 0.0
    %v1206 = vsel %vm93, %v1204, 0.0
    %v1207 = vadd.f32 %v1193, %v1205
    %v1208 = vadd.f32 %v1194, %v1206
    %v1209 = vrot.slane %v1147, 5
    %v1210 = vrot.slane %v1149, 5
    %1213 = vrot.lane.b32.xlu0 %v1209, 126
    %v1214 = vpop.permute.xlu0 %1213
    %1215 = vrot.lane.b32.xlu0 %v1210, 126
    %v1216 = vpop.permute.xlu0 %1215
    %v1217 = vsel %vm158, %v1214, %v1216
    %v1218 = vsel %vm158, %v1216, %v1214
    %v1219 = vsel %vm94, %v1217, 0.0
    %v1220 = vsel %vm95, %v1218, 0.0
    %v1221 = vadd.f32 %v1207, %v1219
    %v1222 = vadd.f32 %v1208, %v1220
    %v1223 = vrot.slane %v1147, 6
    %v1224 = vrot.slane %v1149, 6
    %1227 = vrot.lane.b32.xlu0 %v1223, 125
    %v1228 = vpop.permute.xlu0 %1227
    %1229 = vrot.lane.b32.xlu0 %v1224, 125
    %v1230 = vpop.permute.xlu0 %1229
    %v1231 = vsel %vm167, %v1228, %v1230
    %v1232 = vsel %vm167, %v1230, %v1228
    %v1233 = vsel %vm96, %v1231, 0.0
    %v1234 = vsel %vm97, %v1232, 0.0
    %v1235 = vadd.f32 %v1221, %v1233
    %v1236 = vadd.f32 %v1222, %v1234
    %v1237 = vld [vmem:[#allocation2] sm:$0x1]
    %1239 = vset.pattern.permute.xlu0 0
    %1240 = vperm.xlu0 %1239, %v1237
    %v1241 = vpop.permute.xlu0 %1240
    %v1243 = vlaneseq
    %v1244 = vshrl.u32 %v1243, 7
    %v1245 = vsub.s32 0, %v1244
    %v1246 = vrot.slane %v1241, %v1245
    %v1247 = vadd.f32 %v1235, %v1246
    %v1248 = vadd.f32 %v1236, %v1246
    %v1249 = vtanh.pop %v1247
    %v1250 = vtanh.pop %v1248
    %v1253 = vcombine.low %v1249, %v1250
    %v1255 = vunpack.c.l.s4 1966171168
    %v1256 = vunpack.c.0.s8 %v1255
    %v1257 = vlaneseq
    %v1258 = vshrl.u32 %v1257, 7
    %v1259 = vsub.s32 %v1256, %v1258
    %v1260 = vrot.slane %v1253, %v1259
    %v1262 = vunpack.c.l.s4 1966171168
    %v1263 = vunpack.c.0.s8 %v1262
    %v1264 = vlaneseq
    %v1265 = vshrl.u32 %v1264, 7
    %v1266 = vsub.s32 %v1263, %v1265
    %v1267 = vrot.slane %v1260, %v1266
    %v1269 = vlaneseq
    %vm1270 = vcmp.ge.s32.totalorder %v1269, 0
    %vm1271 = vcmp.lt.s32.totalorder %v1269, 256
    %vm1272 = vmand %vm1270, %vm1271
    %1273 = vst.msk [vmem:[#allocation3] sm:$0x3] %vm1272, %v1267
    // Predicated region
    $region70: #{generator_forward.1} parent=1 // pred_check
      _
    $region71: #{generator_forward.1} parent=1 // pred_check_branch
      %1275 = sbr.rel (0) target = $region73
    $region72: #{generator_forward.1} parent=1 // pred_region
      %s1277 = ssub.s32 32, 32
      %1278 = vsyncadd [#allocation4], %s1277
      %s1280 = sshll.u32 [#allocation3], 4
      %s1281 = int_to_ptr.vmem [resolvable:$true] %s1280
      %1283 = dma.vmem_to_hbm [thread:$0]  %s1281, 32, %s17, [#allocation4]
    $region73: #{generator_forward.1} parent=1 // pred_fallthru
      _
    // Predicated region
    $region74: #{generator_forward.1} parent=1 // pred_check
      _
    $region75: #{generator_forward.1} parent=1 // pred_check_branch
      %1285 = sbr.rel (0) target = $region77
    $region76: #{generator_forward.1} parent=1 // pred_region
      %1286 = dma.done [#allocation4], 32
    $region77: #{generator_forward.1} parent=1 // pred_fallthru
      _
    %1287 = vsyncpa [#allocation4], 1

</llo_original>
